<compile_context>
chip_gen: v7x
topology: tpu7x:2x2x1
jax: 0.10.0
libtpu: 0.0.40
codegen_flags: <defaults>
</compile_context>

<pallas_src>
import jax
import jax.numpy as jnp
from jax.experimental import pallas as pl
from jax.experimental.pallas import tpu as pltpu

GP = 128   # lane pitch per GRU gate (also the padded class dim of the output)


def textrcnn_kernel(x2d_ref,    # (S*BP, 2E) f32   row t*BP+b = [emb[t,b] | emb[S-1-t,b]]
                    wi_ref,     # (2E, 3*GP) bf16  packed block-diag input weights (gate g at lanes g*GP..)
                    wh_ref,     # (GP, 3*GP) bf16  packed block-diag hidden weights (rows 2H..GP are zero)
                    wfc_ref,    # (2E+GP, GP) bf16 rows 0:E = embed part of fc, rows 2E:2E+2H = gru part
                    bias_ref,   # (3, 3*GP) f32    row0: b_ih (+ folded b_hh for r,z), row1: b_hn, row2: b_fc
                    out_ref):   # (BP, GP) f32     lane-dense logits (classes padded to GP)
    sb, e2 = x2d_ref.shape
    gp = wh_ref.shape[0]
    bp, cp = out_ref.shape
    s = sb // bp

    x2d = x2d_ref[...]
    x2d_bf = x2d.astype(jnp.bfloat16)

    bi = bias_ref[0:1, :]                                    # (1, 3*gp)
    bhn = jnp.broadcast_to(bias_ref[1:2, 0:gp], (bp, gp))    # hoisted broadcast (done once)
    bfc = bias_ref[2:3, 0:cp]

    # Hoisted input projections: ONE matmul covers every timestep, both
    # directions and all three gates (M = S*BP, N = 3*GP), biases folded in.
    gi = jnp.dot(x2d_bf, wi_ref[...], preferred_element_type=jnp.float32) + bi

    wh = wh_ref[...]

    h = jnp.zeros((bp, gp), jnp.float32)      # [h_fwd | h_bwd | zero lane pad]
    mx = jnp.zeros((bp, gp), jnp.float32)     # running max of relu(h)     (relu via zero init)
    mx_e = jnp.zeros((bp, e2), jnp.float32)   # running max of relu(embed) (both halves identical)

    # Fully-unrolled merged fwd/bwd recurrence; ONE hidden dot per step.
    for t in range(s):
        lo = t * bp
        gh = jnp.dot(h.astype(jnp.bfloat16), wh, preferred_element_type=jnp.float32)
        r = jax.nn.sigmoid(gi[lo:lo + bp, 0:gp] + gh[:, 0:gp])
        z = jax.nn.sigmoid(gi[lo:lo + bp, gp:2 * gp] + gh[:, gp:2 * gp])
        n = jnp.tanh(gi[lo:lo + bp, 2 * gp:3 * gp] + r * (gh[:, 2 * gp:3 * gp] + bhn))
        h = (1.0 - z) * n + z * h
        mx = jnp.maximum(mx, h)
        mx_e = jnp.maximum(mx_e, x2d[lo:lo + bp, :])   # independent of h -> free filler

    # fc as two dots (embed part + gru part): avoids a lane-shifting concat.
    out = jnp.dot(mx_e.astype(jnp.bfloat16), wfc_ref[0:e2, :],
                  preferred_element_type=jnp.float32)
    out = out + jnp.dot(mx.astype(jnp.bfloat16), wfc_ref[e2:, :],
                        preferred_element_type=jnp.float32)
    out_ref[...] = out + bfc


def prepare_params(params):
    """One-time weight preprocessing: block-diagonalization over the two GRU
    directions, gate packing at a 128-lane pitch, bias folding, fc padding to a
    lane-dense 128-class output, and bf16 cast of all matmul weights."""
    emb = params["embedding"].astype(jnp.float32)
    E = emb.shape[1]
    H = params["w_hh_f"].shape[1]
    C = params["w_fc"].shape[0]
    E2, H2 = 2 * E, 2 * H
    assert H2 <= GP and C <= GP

    def bd(a, b):  # block-diag [[a, 0], [0, b]]
        out = jnp.zeros((a.shape[0] + b.shape[0], a.shape[1] + b.shape[1]), jnp.float32)
        out = out.at[:a.shape[0], :a.shape[1]].set(a)
        out = out.at[a.shape[0]:, a.shape[1]:].set(b)
        return out

    wih_f, wih_b = params["w_ih_f"], params["w_ih_b"]   # (3H, E), gate order r, z, n
    whh_f, whh_b = params["w_hh_f"], params["w_hh_b"]   # (3H, H)
    bih_f, bih_b = params["b_ih_f"], params["b_ih_b"]   # (1, 3H)
    bhh_f, bhh_b = params["b_hh_f"], params["b_hh_b"]   # (1, 3H)

    wi = jnp.zeros((E2, 3 * GP), jnp.float32)
    wh = jnp.zeros((GP, 3 * GP), jnp.float32)
    bias = jnp.zeros((3, 3 * GP), jnp.float32)
    for g in range(3):
        sl = slice(g * H, (g + 1) * H)
        wi = wi.at[:, g * GP:g * GP + H2].set(bd(wih_f[sl].T, wih_b[sl].T))
        wh = wh.at[:H2, g * GP:g * GP + H2].set(bd(whh_f[sl].T, whh_b[sl].T))
        b_g = jnp.concatenate([bih_f[:, sl], bih_b[:, sl]], axis=-1)           # (1, 2H)
        if g < 2:  # r, z gates: hidden bias is purely additive -> fold it in
            b_g = b_g + jnp.concatenate([bhh_f[:, sl], bhh_b[:, sl]], axis=-1)
        bias = bias.at[0, g * GP:g * GP + H2].set(b_g[0])
    # n gate hidden bias sits inside r*(...) -> kept separate (row 1).
    bias = bias.at[1, :H2].set(
        jnp.concatenate([bhh_f[0, 2 * H:], bhh_b[0, 2 * H:]], axis=-1))
    bias = bias.at[2, :C].set(params["b_fc"][0])

    # fc weight, split layout: rows 0:E act on the embed max-pool (rows E:2E
    # stay zero — lanes E:2E of the in-kernel embed max duplicate lanes 0:E),
    # rows 2E:2E+2H act on the GRU max-pool ([fwd | bwd] lane order).
    wfc_t = params["w_fc"].T                       # (E + 2H, C)
    wfc = jnp.zeros((E2 + GP, GP), jnp.float32)
    wfc = wfc.at[:E, :C].set(wfc_t[:E])
    wfc = wfc.at[E2:E2 + H2, :C].set(wfc_t[E:])

    return {
        "embedding": emb,
        "wi": wi.astype(jnp.bfloat16),
        "wh": wh.astype(jnp.bfloat16),
        "wfc": wfc.astype(jnp.bfloat16),
        "bias": bias,
        "num_classes": C,
    }


def textrcnn_forward(token_ids, prep):
    """token_ids: (B, S) int32. Returns logits (B, num_classes) float32."""
    B, S = token_ids.shape
    emb = prep["embedding"]
    E = emb.shape[1]
    C = prep["num_classes"]
    bp = max(8, ((B + 7) // 8) * 8)                 # pad batch to a full sublane group

    # Embedding gather directly in time-major order; pad batch with zero rows.
    # TODO(synk): SpatialDropout(0.5) is identity at inference; training-mode mask not implemented.
    emb_f = jnp.take(emb, token_ids.T, axis=0)                     # (S, B, E)
    if B < bp:
        emb_f = jnp.pad(emb_f, ((0, 0), (0, bp - B), (0, 0)))
    x2d = jnp.concatenate([emb_f, emb_f[::-1]], axis=-1).reshape(S * bp, 2 * E)

    vmem = lambda: pl.BlockSpec(memory_space=pltpu.MemorySpace.VMEM)
    args = (x2d, prep["wi"], prep["wh"], prep["wfc"], prep["bias"])
    out = pl.pallas_call(
        textrcnn_kernel,
        out_shape=jax.ShapeDtypeStruct((bp, GP), jnp.float32),
        in_specs=[vmem() for _ in args],
        out_specs=vmem(),
    )(*args)
    return out[:B, :C]


def init_params(key, vocab_size, embedding_size, hidden_size, num_classes):
    """Deterministic parameter init mirroring _init_parameters:
    kaiming-normal for dim>1 tensors, zeros for 1-D tensors (biases)."""
    H, E, C = hidden_size, embedding_size, num_classes
    keys = jax.random.split(key, 8)

    def kaiming(k, shape, fan_in):
        return (jax.random.normal(k, shape, dtype=jnp.float32)
                * jnp.sqrt(2.0 / fan_in))

    return {
        "embedding": kaiming(keys[0], (vocab_size, E), E),
        # forward direction GRU (PyTorch layout, gate order r, z, n)
        "w_ih_f": kaiming(keys[1], (3 * H, E), E),
        "w_hh_f": kaiming(keys[2], (3 * H, H), H),
        "b_ih_f": jnp.zeros((1, 3 * H), jnp.float32),
        "b_hh_f": jnp.zeros((1, 3 * H), jnp.float32),
        # backward direction GRU
        "w_ih_b": kaiming(keys[3], (3 * H, E), E),
        "w_hh_b": kaiming(keys[4], (3 * H, H), H),
        "b_ih_b": jnp.zeros((1, 3 * H), jnp.float32),
        "b_hh_b": jnp.zeros((1, 3 * H), jnp.float32),
        # fc: Linear(2H + E, 17)
        "w_fc": kaiming(keys[5], (C, 2 * H + E), 2 * H + E),
        "b_fc": jnp.zeros((1, C), jnp.float32),
    }


if __name__ == "__main__":
    # batch=2, seq_len=8, embedding=32, hidden=32, 1 bidirectional GRU layer,
    # 17 classes, vocab=860 (859 + pad row).
    B, S, E, H, C, V = 2, 8, 32, 32, 17, 860

    key = jax.random.PRNGKey(0)
    k_tok, k_par = jax.random.split(key)

    params = init_params(k_par, V, E, H, C)
    prep = prepare_params(params)                    # one-time weight prep (hoisted)
    token_ids = jax.random.randint(k_tok, (B, S), minval=0, maxval=V, dtype=jnp.int32)

    fwd = jax.jit(lambda ids: textrcnn_forward(ids, prep))
    logits = jax.block_until_ready(fwd(token_ids))

    assert logits.shape == (B, C), logits.shape
    assert logits.dtype == jnp.float32, logits.dtype
    assert bool(jnp.all(jnp.isfinite(logits)))
    print("KERNEL_OK")
</pallas_src>

<mosaic_0001>
module attributes {stable_mosaic.version = 11 : i64} {
  func.func @textrcnn_kernel(%arg0: memref<64x64xf32, #tpu.memory_space<vmem>>, %arg1: memref<64x384xbf16, #tpu.memory_space<vmem>>, %arg2: memref<128x384xbf16, #tpu.memory_space<vmem>>, %arg3: memref<192x128xbf16, #tpu.memory_space<vmem>>, %arg4: memref<3x384xf32, #tpu.memory_space<vmem>>, %arg5: memref<8x128xf32, #tpu.memory_space<vmem>>) attributes {dimension_semantics = [], scalar_prefetch = 0 : i64, scratch_operands = 0 : i64, tpu.core_type = #tpu.core_type<tc>} {
    %c0 = arith.constant 0 : index
    %c0_0 = arith.constant 0 : index
    %0 = vector.load %arg0[%c0, %c0_0] : memref<64x64xf32, #tpu.memory_space<vmem>>, vector<64x64xf32>
    %1 = arith.truncf %0 : vector<64x64xf32> to vector<64x64xbf16>
    %c0_1 = arith.constant 0 : index
    %c0_2 = arith.constant 0 : index
    %2 = vector.load %arg4[%c0_1, %c0_2] : memref<3x384xf32, #tpu.memory_space<vmem>>, vector<1x384xf32>
    %c1 = arith.constant 1 : index
    %c0_3 = arith.constant 0 : index
    %3 = vector.load %arg4[%c1, %c0_3] : memref<3x384xf32, #tpu.memory_space<vmem>>, vector<1x128xf32>
    %4 = vector.shape_cast %3 : vector<1x128xf32> to vector<1x128xf32>
    %5 = vector.broadcast %4 : vector<1x128xf32> to vector<8x128xf32>
    %c2 = arith.constant 2 : index
    %c0_4 = arith.constant 0 : index
    %6 = vector.load %arg4[%c2, %c0_4] : memref<3x384xf32, #tpu.memory_space<vmem>>, vector<1x128xf32>
    %c0_5 = arith.constant 0 : index
    %c0_6 = arith.constant 0 : index
    %7 = vector.load %arg1[%c0_5, %c0_6] : memref<64x384xbf16, #tpu.memory_space<vmem>>, vector<64x384xbf16>
    %cst = arith.constant dense<0.000000e+00> : vector<64x384xf32>
    %8 = tpu.matmul %1, %7, %cst {dimension_numbers = #tpu.dot_dimension_numbers<[1], [0], [0], [1], [0, 0, 1, 1], [], []>} : vector<64x64xbf16>, vector<64x384xbf16>, vector<64x384xf32> -> vector<64x384xf32>
    %9 = vector.broadcast %2 : vector<1x384xf32> to vector<64x384xf32>
    %10 = arith.addf %8, %9 : vector<64x384xf32>
    %c0_7 = arith.constant 0 : index
    %c0_8 = arith.constant 0 : index
    %11 = vector.load %arg2[%c0_7, %c0_8] : memref<128x384xbf16, #tpu.memory_space<vmem>>, vector<128x384xbf16>
    %cst_9 = arith.constant 0.000000e+00 : f32
    %12 = vector.broadcast %cst_9 : f32 to vector<8x128xf32>
    %cst_10 = arith.constant 0.000000e+00 : f32
    %13 = vector.broadcast %cst_10 : f32 to vector<8x128xf32>
    %cst_11 = arith.constant 0.000000e+00 : f32
    %14 = vector.broadcast %cst_11 : f32 to vector<8x64xf32>
    %15 = arith.truncf %12 : vector<8x128xf32> to vector<8x128xbf16>
    %cst_12 = arith.constant dense<0.000000e+00> : vector<8x384xf32>
    %16 = tpu.matmul %15, %11, %cst_12 {dimension_numbers = #tpu.dot_dimension_numbers<[1], [0], [0], [1], [0, 0, 1, 1], [], []>} : vector<8x128xbf16>, vector<128x384xbf16>, vector<8x384xf32> -> vector<8x384xf32>
    %17 = vector.extract_strided_slice %10 {offsets = [0, 0], sizes = [8, 128], strides = [1, 1]} : vector<64x384xf32> to vector<8x128xf32>
    %18 = vector.extract_strided_slice %16 {offsets = [0, 0], sizes = [8, 128], strides = [1, 1]} : vector<8x384xf32> to vector<8x128xf32>
    %19 = arith.addf %17, %18 : vector<8x128xf32>
    %20 = arith.negf %19 : vector<8x128xf32>
    %21 = math.exp %20 : vector<8x128xf32>
    %cst_13 = arith.constant 1.000000e+00 : f32
    %22 = vector.broadcast %cst_13 : f32 to vector<8x128xf32>
    %23 = arith.addf %22, %21 : vector<8x128xf32>
    %24 = arith.divf %22, %23 : vector<8x128xf32>
    %25 = vector.extract_strided_slice %10 {offsets = [0, 128], sizes = [8, 128], strides = [1, 1]} : vector<64x384xf32> to vector<8x128xf32>
    %26 = vector.extract_strided_slice %16 {offsets = [0, 128], sizes = [8, 128], strides = [1, 1]} : vector<8x384xf32> to vector<8x128xf32>
    %27 = arith.addf %25, %26 : vector<8x128xf32>
    %28 = arith.negf %27 : vector<8x128xf32>
    %29 = math.exp %28 : vector<8x128xf32>
    %cst_14 = arith.constant 1.000000e+00 : f32
    %30 = vector.broadcast %cst_14 : f32 to vector<8x128xf32>
    %31 = arith.addf %30, %29 : vector<8x128xf32>
    %32 = arith.divf %30, %31 : vector<8x128xf32>
    %33 = vector.extract_strided_slice %10 {offsets = [0, 256], sizes = [8, 128], strides = [1, 1]} : vector<64x384xf32> to vector<8x128xf32>
    %34 = vector.extract_strided_slice %16 {offsets = [0, 256], sizes = [8, 128], strides = [1, 1]} : vector<8x384xf32> to vector<8x128xf32>
    %35 = arith.addf %34, %5 : vector<8x128xf32>
    %36 = arith.mulf %24, %35 : vector<8x128xf32>
    %37 = arith.addf %33, %36 : vector<8x128xf32>
    %38 = math.tanh %37 : vector<8x128xf32>
    %cst_15 = arith.constant 1.000000e+00 : f32
    %39 = vector.broadcast %cst_15 : f32 to vector<8x128xf32>
    %40 = arith.subf %39, %32 : vector<8x128xf32>
    %41 = arith.mulf %40, %38 : vector<8x128xf32>
    %42 = arith.mulf %32, %12 : vector<8x128xf32>
    %43 = arith.addf %41, %42 : vector<8x128xf32>
    %44 = arith.maximumf %13, %43 : vector<8x128xf32>
    %45 = vector.extract_strided_slice %0 {offsets = [0, 0], sizes = [8, 64], strides = [1, 1]} : vector<64x64xf32> to vector<8x64xf32>
    %46 = arith.maximumf %14, %45 : vector<8x64xf32>
    %47 = arith.truncf %43 : vector<8x128xf32> to vector<8x128xbf16>
    %cst_16 = arith.constant dense<0.000000e+00> : vector<8x384xf32>
    %48 = tpu.matmul %47, %11, %cst_16 {dimension_numbers = #tpu.dot_dimension_numbers<[1], [0], [0], [1], [0, 0, 1, 1], [], []>} : vector<8x128xbf16>, vector<128x384xbf16>, vector<8x384xf32> -> vector<8x384xf32>
    %49 = vector.extract_strided_slice %10 {offsets = [8, 0], sizes = [8, 128], strides = [1, 1]} : vector<64x384xf32> to vector<8x128xf32>
    %50 = vector.extract_strided_slice %48 {offsets = [0, 0], sizes = [8, 128], strides = [1, 1]} : vector<8x384xf32> to vector<8x128xf32>
    %51 = arith.addf %49, %50 : vector<8x128xf32>
    %52 = arith.negf %51 : vector<8x128xf32>
    %53 = math.exp %52 : vector<8x128xf32>
    %cst_17 = arith.constant 1.000000e+00 : f32
    %54 = vector.broadcast %cst_17 : f32 to vector<8x128xf32>
    %55 = arith.addf %54, %53 : vector<8x128xf32>
    %56 = arith.divf %54, %55 : vector<8x128xf32>
    %57 = vector.extract_strided_slice %10 {offsets = [8, 128], sizes = [8, 128], strides = [1, 1]} : vector<64x384xf32> to vector<8x128xf32>
    %58 = vector.extract_strided_slice %48 {offsets = [0, 128], sizes = [8, 128], strides = [1, 1]} : vector<8x384xf32> to vector<8x128xf32>
    %59 = arith.addf %57, %58 : vector<8x128xf32>
    %60 = arith.negf %59 : vector<8x128xf32>
    %61 = math.exp %60 : vector<8x128xf32>
    %cst_18 = arith.constant 1.000000e+00 : f32
    %62 = vector.broadcast %cst_18 : f32 to vector<8x128xf32>
    %63 = arith.addf %62, %61 : vector<8x128xf32>
    %64 = arith.divf %62, %63 : vector<8x128xf32>
    %65 = vector.extract_strided_slice %10 {offsets = [8, 256], sizes = [8, 128], strides = [1, 1]} : vector<64x384xf32> to vector<8x128xf32>
    %66 = vector.extract_strided_slice %48 {offsets = [0, 256], sizes = [8, 128], strides = [1, 1]} : vector<8x384xf32> to vector<8x128xf32>
    %67 = arith.addf %66, %5 : vector<8x128xf32>
    %68 = arith.mulf %56, %67 : vector<8x128xf32>
    %69 = arith.addf %65, %68 : vector<8x128xf32>
    %70 = math.tanh %69 : vector<8x128xf32>
    %cst_19 = arith.constant 1.000000e+00 : f32
    %71 = vector.broadcast %cst_19 : f32 to vector<8x128xf32>
    %72 = arith.subf %71, %64 : vector<8x128xf32>
    %73 = arith.mulf %72, %70 : vector<8x128xf32>
    %74 = arith.mulf %64, %43 : vector<8x128xf32>
    %75 = arith.addf %73, %74 : vector<8x128xf32>
    %76 = arith.maximumf %44, %75 : vector<8x128xf32>
    %77 = vector.extract_strided_slice %0 {offsets = [8, 0], sizes = [8, 64], strides = [1, 1]} : vector<64x64xf32> to vector<8x64xf32>
    %78 = arith.maximumf %46, %77 : vector<8x64xf32>
    %79 = arith.truncf %75 : vector<8x128xf32> to vector<8x128xbf16>
    %cst_20 = arith.constant dense<0.000000e+00> : vector<8x384xf32>
    %80 = tpu.matmul %79, %11, %cst_20 {dimension_numbers = #tpu.dot_dimension_numbers<[1], [0], [0], [1], [0, 0, 1, 1], [], []>} : vector<8x128xbf16>, vector<128x384xbf16>, vector<8x384xf32> -> vector<8x384xf32>
    %81 = vector.extract_strided_slice %10 {offsets = [16, 0], sizes = [8, 128], strides = [1, 1]} : vector<64x384xf32> to vector<8x128xf32>
    %82 = vector.extract_strided_slice %80 {offsets = [0, 0], sizes = [8, 128], strides = [1, 1]} : vector<8x384xf32> to vector<8x128xf32>
    %83 = arith.addf %81, %82 : vector<8x128xf32>
    %84 = arith.negf %83 : vector<8x128xf32>
    %85 = math.exp %84 : vector<8x128xf32>
    %cst_21 = arith.constant 1.000000e+00 : f32
    %86 = vector.broadcast %cst_21 : f32 to vector<8x128xf32>
    %87 = arith.addf %86, %85 : vector<8x128xf32>
    %88 = arith.divf %86, %87 : vector<8x128xf32>
    %89 = vector.extract_strided_slice %10 {offsets = [16, 128], sizes = [8, 128], strides = [1, 1]} : vector<64x384xf32> to vector<8x128xf32>
    %90 = vector.extract_strided_slice %80 {offsets = [0, 128], sizes = [8, 128], strides = [1, 1]} : vector<8x384xf32> to vector<8x128xf32>
    %91 = arith.addf %89, %90 : vector<8x128xf32>
    %92 = arith.negf %91 : vector<8x128xf32>
    %93 = math.exp %92 : vector<8x128xf32>
    %cst_22 = arith.constant 1.000000e+00 : f32
    %94 = vector.broadcast %cst_22 : f32 to vector<8x128xf32>
    %95 = arith.addf %94, %93 : vector<8x128xf32>
    %96 = arith.divf %94, %95 : vector<8x128xf32>
    %97 = vector.extract_strided_slice %10 {offsets = [16, 256], sizes = [8, 128], strides = [1, 1]} : vector<64x384xf32> to vector<8x128xf32>
    %98 = vector.extract_strided_slice %80 {offsets = [0, 256], sizes = [8, 128], strides = [1, 1]} : vector<8x384xf32> to vector<8x128xf32>
    %99 = arith.addf %98, %5 : vector<8x128xf32>
    %100 = arith.mulf %88, %99 : vector<8x128xf32>
    %101 = arith.addf %97, %100 : vector<8x128xf32>
    %102 = math.tanh %101 : vector<8x128xf32>
    %cst_23 = arith.constant 1.000000e+00 : f32
    %103 = vector.broadcast %cst_23 : f32 to vector<8x128xf32>
    %104 = arith.subf %103, %96 : vector<8x128xf32>
    %105 = arith.mulf %104, %102 : vector<8x128xf32>
    %106 = arith.mulf %96, %75 : vector<8x128xf32>
    %107 = arith.addf %105, %106 : vector<8x128xf32>
    %108 = arith.maximumf %76, %107 : vector<8x128xf32>
    %109 = vector.extract_strided_slice %0 {offsets = [16, 0], sizes = [8, 64], strides = [1, 1]} : vector<64x64xf32> to vector<8x64xf32>
    %110 = arith.maximumf %78, %109 : vector<8x64xf32>
    %111 = arith.truncf %107 : vector<8x128xf32> to vector<8x128xbf16>
    %cst_24 = arith.constant dense<0.000000e+00> : vector<8x384xf32>
    %112 = tpu.matmul %111, %11, %cst_24 {dimension_numbers = #tpu.dot_dimension_numbers<[1], [0], [0], [1], [0, 0, 1, 1], [], []>} : vector<8x128xbf16>, vector<128x384xbf16>, vector<8x384xf32> -> vector<8x384xf32>
    %113 = vector.extract_strided_slice %10 {offsets = [24, 0], sizes = [8, 128], strides = [1, 1]} : vector<64x384xf32> to vector<8x128xf32>
    %114 = vector.extract_strided_slice %112 {offsets = [0, 0], sizes = [8, 128], strides = [1, 1]} : vector<8x384xf32> to vector<8x128xf32>
    %115 = arith.addf %113, %114 : vector<8x128xf32>
    %116 = arith.negf %115 : vector<8x128xf32>
    %117 = math.exp %116 : vector<8x128xf32>
    %cst_25 = arith.constant 1.000000e+00 : f32
    %118 = vector.broadcast %cst_25 : f32 to vector<8x128xf32>
    %119 = arith.addf %118, %117 : vector<8x128xf32>
    %120 = arith.divf %118, %119 : vector<8x128xf32>
    %121 = vector.extract_strided_slice %10 {offsets = [24, 128], sizes = [8, 128], strides = [1, 1]} : vector<64x384xf32> to vector<8x128xf32>
    %122 = vector.extract_strided_slice %112 {offsets = [0, 128], sizes = [8, 128], strides = [1, 1]} : vector<8x384xf32> to vector<8x128xf32>
    %123 = arith.addf %121, %122 : vector<8x128xf32>
    %124 = arith.negf %123 : vector<8x128xf32>
    %125 = math.exp %124 : vector<8x128xf32>
    %cst_26 = arith.constant 1.000000e+00 : f32
    %126 = vector.broadcast %cst_26 : f32 to vector<8x128xf32>
    %127 = arith.addf %126, %125 : vector<8x128xf32>
    %128 = arith.divf %126, %127 : vector<8x128xf32>
    %129 = vector.extract_strided_slice %10 {offsets = [24, 256], sizes = [8, 128], strides = [1, 1]} : vector<64x384xf32> to vector<8x128xf32>
    %130 = vector.extract_strided_slice %112 {offsets = [0, 256], sizes = [8, 128], strides = [1, 1]} : vector<8x384xf32> to vector<8x128xf32>
    %131 = arith.addf %130, %5 : vector<8x128xf32>
    %132 = arith.mulf %120, %131 : vector<8x128xf32>
    %133 = arith.addf %129, %132 : vector<8x128xf32>
    %134 = math.tanh %133 : vector<8x128xf32>
    %cst_27 = arith.constant 1.000000e+00 : f32
    %135 = vector.broadcast %cst_27 : f32 to vector<8x128xf32>
    %136 = arith.subf %135, %128 : vector<8x128xf32>
    %137 = arith.mulf %136, %134 : vector<8x128xf32>
    %138 = arith.mulf %128, %107 : vector<8x128xf32>
    %139 = arith.addf %137, %138 : vector<8x128xf32>
    %140 = arith.maximumf %108, %139 : vector<8x128xf32>
    %141 = vector.extract_strided_slice %0 {offsets = [24, 0], sizes = [8, 64], strides = [1, 1]} : vector<64x64xf32> to vector<8x64xf32>
    %142 = arith.maximumf %110, %141 : vector<8x64xf32>
    %143 = arith.truncf %139 : vector<8x128xf32> to vector<8x128xbf16>
    %cst_28 = arith.constant dense<0.000000e+00> : vector<8x384xf32>
    %144 = tpu.matmul %143, %11, %cst_28 {dimension_numbers = #tpu.dot_dimension_numbers<[1], [0], [0], [1], [0, 0, 1, 1], [], []>} : vector<8x128xbf16>, vector<128x384xbf16>, vector<8x384xf32> -> vector<8x384xf32>
    %145 = vector.extract_strided_slice %10 {offsets = [32, 0], sizes = [8, 128], strides = [1, 1]} : vector<64x384xf32> to vector<8x128xf32>
    %146 = vector.extract_strided_slice %144 {offsets = [0, 0], sizes = [8, 128], strides = [1, 1]} : vector<8x384xf32> to vector<8x128xf32>
    %147 = arith.addf %145, %146 : vector<8x128xf32>
    %148 = arith.negf %147 : vector<8x128xf32>
    %149 = math.exp %148 : vector<8x128xf32>
    %cst_29 = arith.constant 1.000000e+00 : f32
    %150 = vector.broadcast %cst_29 : f32 to vector<8x128xf32>
    %151 = arith.addf %150, %149 : vector<8x128xf32>
    %152 = arith.divf %150, %151 : vector<8x128xf32>
    %153 = vector.extract_strided_slice %10 {offsets = [32, 128], sizes = [8, 128], strides = [1, 1]} : vector<64x384xf32> to vector<8x128xf32>
    %154 = vector.extract_strided_slice %144 {offsets = [0, 128], sizes = [8, 128], strides = [1, 1]} : vector<8x384xf32> to vector<8x128xf32>
    %155 = arith.addf %153, %154 : vector<8x128xf32>
    %156 = arith.negf %155 : vector<8x128xf32>
    %157 = math.exp %156 : vector<8x128xf32>
    %cst_30 = arith.constant 1.000000e+00 : f32
    %158 = vector.broadcast %cst_30 : f32 to vector<8x128xf32>
    %159 = arith.addf %158, %157 : vector<8x128xf32>
    %160 = arith.divf %158, %159 : vector<8x128xf32>
    %161 = vector.extract_strided_slice %10 {offsets = [32, 256], sizes = [8, 128], strides = [1, 1]} : vector<64x384xf32> to vector<8x128xf32>
    %162 = vector.extract_strided_slice %144 {offsets = [0, 256], sizes = [8, 128], strides = [1, 1]} : vector<8x384xf32> to vector<8x128xf32>
    %163 = arith.addf %162, %5 : vector<8x128xf32>
    %164 = arith.mulf %152, %163 : vector<8x128xf32>
    %165 = arith.addf %161, %164 : vector<8x128xf32>
    %166 = math.tanh %165 : vector<8x128xf32>
    %cst_31 = arith.constant 1.000000e+00 : f32
    %167 = vector.broadcast %cst_31 : f32 to vector<8x128xf32>
    %168 = arith.subf %167, %160 : vector<8x128xf32>
    %169 = arith.mulf %168, %166 : vector<8x128xf32>
    %170 = arith.mulf %160, %139 : vector<8x128xf32>
    %171 = arith.addf %169, %170 : vector<8x128xf32>
    %172 = arith.maximumf %140, %171 : vector<8x128xf32>
    %173 = vector.extract_strided_slice %0 {offsets = [32, 0], sizes = [8, 64], strides = [1, 1]} : vector<64x64xf32> to vector<8x64xf32>
    %174 = arith.maximumf %142, %173 : vector<8x64xf32>
    %175 = arith.truncf %171 : vector<8x128xf32> to vector<8x128xbf16>
    %cst_32 = arith.constant dense<0.000000e+00> : vector<8x384xf32>
    %176 = tpu.matmul %175, %11, %cst_32 {dimension_numbers = #tpu.dot_dimension_numbers<[1], [0], [0], [1], [0, 0, 1, 1], [], []>} : vector<8x128xbf16>, vector<128x384xbf16>, vector<8x384xf32> -> vector<8x384xf32>
    %177 = vector.extract_strided_slice %10 {offsets = [40, 0], sizes = [8, 128], strides = [1, 1]} : vector<64x384xf32> to vector<8x128xf32>
    %178 = vector.extract_strided_slice %176 {offsets = [0, 0], sizes = [8, 128], strides = [1, 1]} : vector<8x384xf32> to vector<8x128xf32>
    %179 = arith.addf %177, %178 : vector<8x128xf32>
    %180 = arith.negf %179 : vector<8x128xf32>
    %181 = math.exp %180 : vector<8x128xf32>
    %cst_33 = arith.constant 1.000000e+00 : f32
    %182 = vector.broadcast %cst_33 : f32 to vector<8x128xf32>
    %183 = arith.addf %182, %181 : vector<8x128xf32>
    %184 = arith.divf %182, %183 : vector<8x128xf32>
    %185 = vector.extract_strided_slice %10 {offsets = [40, 128], sizes = [8, 128], strides = [1, 1]} : vector<64x384xf32> to vector<8x128xf32>
    %186 = vector.extract_strided_slice %176 {offsets = [0, 128], sizes = [8, 128], strides = [1, 1]} : vector<8x384xf32> to vector<8x128xf32>
    %187 = arith.addf %185, %186 : vector<8x128xf32>
    %188 = arith.negf %187 : vector<8x128xf32>
    %189 = math.exp %188 : vector<8x128xf32>
    %cst_34 = arith.constant 1.000000e+00 : f32
    %190 = vector.broadcast %cst_34 : f32 to vector<8x128xf32>
    %191 = arith.addf %190, %189 : vector<8x128xf32>
    %192 = arith.divf %190, %191 : vector<8x128xf32>
    %193 = vector.extract_strided_slice %10 {offsets = [40, 256], sizes = [8, 128], strides = [1, 1]} : vector<64x384xf32> to vector<8x128xf32>
    %194 = vector.extract_strided_slice %176 {offsets = [0, 256], sizes = [8, 128], strides = [1, 1]} : vector<8x384xf32> to vector<8x128xf32>
    %195 = arith.addf %194, %5 : vector<8x128xf32>
    %196 = arith.mulf %184, %195 : vector<8x128xf32>
    %197 = arith.addf %193, %196 : vector<8x128xf32>
    %198 = math.tanh %197 : vector<8x128xf32>
    %cst_35 = arith.constant 1.000000e+00 : f32
    %199 = vector.broadcast %cst_35 : f32 to vector<8x128xf32>
    %200 = arith.subf %199, %192 : vector<8x128xf32>
    %201 = arith.mulf %200, %198 : vector<8x128xf32>
    %202 = arith.mulf %192, %171 : vector<8x128xf32>
    %203 = arith.addf %201, %202 : vector<8x128xf32>
    %204 = arith.maximumf %172, %203 : vector<8x128xf32>
    %205 = vector.extract_strided_slice %0 {offsets = [40, 0], sizes = [8, 64], strides = [1, 1]} : vector<64x64xf32> to vector<8x64xf32>
    %206 = arith.maximumf %174, %205 : vector<8x64xf32>
    %207 = arith.truncf %203 : vector<8x128xf32> to vector<8x128xbf16>
    %cst_36 = arith.constant dense<0.000000e+00> : vector<8x384xf32>
    %208 = tpu.matmul %207, %11, %cst_36 {dimension_numbers = #tpu.dot_dimension_numbers<[1], [0], [0], [1], [0, 0, 1, 1], [], []>} : vector<8x128xbf16>, vector<128x384xbf16>, vector<8x384xf32> -> vector<8x384xf32>
    %209 = vector.extract_strided_slice %10 {offsets = [48, 0], sizes = [8, 128], strides = [1, 1]} : vector<64x384xf32> to vector<8x128xf32>
    %210 = vector.extract_strided_slice %208 {offsets = [0, 0], sizes = [8, 128], strides = [1, 1]} : vector<8x384xf32> to vector<8x128xf32>
    %211 = arith.addf %209, %210 : vector<8x128xf32>
    %212 = arith.negf %211 : vector<8x128xf32>
    %213 = math.exp %212 : vector<8x128xf32>
    %cst_37 = arith.constant 1.000000e+00 : f32
    %214 = vector.broadcast %cst_37 : f32 to vector<8x128xf32>
    %215 = arith.addf %214, %213 : vector<8x128xf32>
    %216 = arith.divf %214, %215 : vector<8x128xf32>
    %217 = vector.extract_strided_slice %10 {offsets = [48, 128], sizes = [8, 128], strides = [1, 1]} : vector<64x384xf32> to vector<8x128xf32>
    %218 = vector.extract_strided_slice %208 {offsets = [0, 128], sizes = [8, 128], strides = [1, 1]} : vector<8x384xf32> to vector<8x128xf32>
    %219 = arith.addf %217, %218 : vector<8x128xf32>
    %220 = arith.negf %219 : vector<8x128xf32>
    %221 = math.exp %220 : vector<8x128xf32>
    %cst_38 = arith.constant 1.000000e+00 : f32
    %222 = vector.broadcast %cst_38 : f32 to vector<8x128xf32>
    %223 = arith.addf %222, %221 : vector<8x128xf32>
    %224 = arith.divf %222, %223 : vector<8x128xf32>
    %225 = vector.extract_strided_slice %10 {offsets = [48, 256], sizes = [8, 128], strides = [1, 1]} : vector<64x384xf32> to vector<8x128xf32>
    %226 = vector.extract_strided_slice %208 {offsets = [0, 256], sizes = [8, 128], strides = [1, 1]} : vector<8x384xf32> to vector<8x128xf32>
    %227 = arith.addf %226, %5 : vector<8x128xf32>
    %228 = arith.mulf %216, %227 : vector<8x128xf32>
    %229 = arith.addf %225, %228 : vector<8x128xf32>
    %230 = math.tanh %229 : vector<8x128xf32>
    %cst_39 = arith.constant 1.000000e+00 : f32
    %231 = vector.broadcast %cst_39 : f32 to vector<8x128xf32>
    %232 = arith.subf %231, %224 : vector<8x128xf32>
    %233 = arith.mulf %232, %230 : vector<8x128xf32>
    %234 = arith.mulf %224, %203 : vector<8x128xf32>
    %235 = arith.addf %233, %234 : vector<8x128xf32>
    %236 = arith.maximumf %204, %235 : vector<8x128xf32>
    %237 = vector.extract_strided_slice %0 {offsets = [48, 0], sizes = [8, 64], strides = [1, 1]} : vector<64x64xf32> to vector<8x64xf32>
    %238 = arith.maximumf %206, %237 : vector<8x64xf32>
    %239 = arith.truncf %235 : vector<8x128xf32> to vector<8x128xbf16>
    %cst_40 = arith.constant dense<0.000000e+00> : vector<8x384xf32>
    %240 = tpu.matmul %239, %11, %cst_40 {dimension_numbers = #tpu.dot_dimension_numbers<[1], [0], [0], [1], [0, 0, 1, 1], [], []>} : vector<8x128xbf16>, vector<128x384xbf16>, vector<8x384xf32> -> vector<8x384xf32>
    %241 = vector.extract_strided_slice %10 {offsets = [56, 0], sizes = [8, 128], strides = [1, 1]} : vector<64x384xf32> to vector<8x128xf32>
    %242 = vector.extract_strided_slice %240 {offsets = [0, 0], sizes = [8, 128], strides = [1, 1]} : vector<8x384xf32> to vector<8x128xf32>
    %243 = arith.addf %241, %242 : vector<8x128xf32>
    %244 = arith.negf %243 : vector<8x128xf32>
    %245 = math.exp %244 : vector<8x128xf32>
    %cst_41 = arith.constant 1.000000e+00 : f32
    %246 = vector.broadcast %cst_41 : f32 to vector<8x128xf32>
    %247 = arith.addf %246, %245 : vector<8x128xf32>
    %248 = arith.divf %246, %247 : vector<8x128xf32>
    %249 = vector.extract_strided_slice %10 {offsets = [56, 128], sizes = [8, 128], strides = [1, 1]} : vector<64x384xf32> to vector<8x128xf32>
    %250 = vector.extract_strided_slice %240 {offsets = [0, 128], sizes = [8, 128], strides = [1, 1]} : vector<8x384xf32> to vector<8x128xf32>
    %251 = arith.addf %249, %250 : vector<8x128xf32>
    %252 = arith.negf %251 : vector<8x128xf32>
    %253 = math.exp %252 : vector<8x128xf32>
    %cst_42 = arith.constant 1.000000e+00 : f32
    %254 = vector.broadcast %cst_42 : f32 to vector<8x128xf32>
    %255 = arith.addf %254, %253 : vector<8x128xf32>
    %256 = arith.divf %254, %255 : vector<8x128xf32>
    %257 = vector.extract_strided_slice %10 {offsets = [56, 256], sizes = [8, 128], strides = [1, 1]} : vector<64x384xf32> to vector<8x128xf32>
    %258 = vector.extract_strided_slice %240 {offsets = [0, 256], sizes = [8, 128], strides = [1, 1]} : vector<8x384xf32> to vector<8x128xf32>
    %259 = arith.addf %258, %5 : vector<8x128xf32>
    %260 = arith.mulf %248, %259 : vector<8x128xf32>
    %261 = arith.addf %257, %260 : vector<8x128xf32>
    %262 = math.tanh %261 : vector<8x128xf32>
    %cst_43 = arith.constant 1.000000e+00 : f32
    %263 = vector.broadcast %cst_43 : f32 to vector<8x128xf32>
    %264 = arith.subf %263, %256 : vector<8x128xf32>
    %265 = arith.mulf %264, %262 : vector<8x128xf32>
    %266 = arith.mulf %256, %235 : vector<8x128xf32>
    %267 = arith.addf %265, %266 : vector<8x128xf32>
    %268 = arith.maximumf %236, %267 : vector<8x128xf32>
    %269 = vector.extract_strided_slice %0 {offsets = [56, 0], sizes = [8, 64], strides = [1, 1]} : vector<64x64xf32> to vector<8x64xf32>
    %270 = arith.maximumf %238, %269 : vector<8x64xf32>
    %271 = arith.truncf %270 : vector<8x64xf32> to vector<8x64xbf16>
    %c0_44 = arith.constant 0 : index
    %c0_45 = arith.constant 0 : index
    %272 = vector.load %arg3[%c0_44, %c0_45] : memref<192x128xbf16, #tpu.memory_space<vmem>>, vector<64x128xbf16>
    %cst_46 = arith.constant dense<0.000000e+00> : vector<8x128xf32>
    %273 = tpu.matmul %271, %272, %cst_46 {dimension_numbers = #tpu.dot_dimension_numbers<[1], [0], [0], [1], [0, 0, 1, 1], [], []>} : vector<8x64xbf16>, vector<64x128xbf16>, vector<8x128xf32> -> vector<8x128xf32>
    %274 = arith.truncf %268 : vector<8x128xf32> to vector<8x128xbf16>
    %c64 = arith.constant 64 : index
    %c0_47 = arith.constant 0 : index
    %275 = vector.load %arg3[%c64, %c0_47] : memref<192x128xbf16, #tpu.memory_space<vmem>>, vector<128x128xbf16>
    %cst_48 = arith.constant dense<0.000000e+00> : vector<8x128xf32>
    %276 = tpu.matmul %274, %275, %cst_48 {dimension_numbers = #tpu.dot_dimension_numbers<[1], [0], [0], [1], [0, 0, 1, 1], [], []>} : vector<8x128xbf16>, vector<128x128xbf16>, vector<8x128xf32> -> vector<8x128xf32>
    %277 = arith.addf %273, %276 : vector<8x128xf32>
    %278 = vector.broadcast %6 : vector<1x128xf32> to vector<8x128xf32>
    %279 = arith.addf %277, %278 : vector<8x128xf32>
    %c0_49 = arith.constant 0 : index
    %c0_50 = arith.constant 0 : index
    %280 = vector.load %arg5[%c0_49, %c0_50] : memref<8x128xf32, #tpu.memory_space<vmem>>, vector<8x128xf32>
    tpu.vector_store %arg5[%c0_49, %c0_50], %279 {strides = array<i32>} : memref<8x128xf32, #tpu.memory_space<vmem>>, vector<8x128xf32>,
    return
  }
}

</mosaic_0001>

<llo_original>
// kernel: _lambda_.1
$region0: #{_lambda_.1}
  #allocation0 [shape = 'u32[]', space=smem, size = 0x4, offset = 0x4, fixed_abs, tag = 'smem constant byte address 0x4 - core index']
  #allocation1 [shape = 'u32[144,128]{1,0:T(1,128)}', space=vmem, size = 0x12000, scoped, tag = 'internal scratch']
  %s0 = inlined_call_operand.vmem [shape: f32[64,64], index: 0, kind: input, shape index: {}]
  %s1 = inlined_call_operand.vmem [shape: bf16[64,384], index: 1, kind: input, shape index: {}]
  %s2 = inlined_call_operand.vmem [shape: bf16[128,384], index: 2, kind: input, shape index: {}]
  %s3 = inlined_call_operand.vmem [shape: bf16[192,128], index: 3, kind: input, shape index: {}]
  %s4 = inlined_call_operand.vmem [shape: f32[3,384], index: 4, kind: input, shape index: {}]
  %s5 = inlined_call_operand.vmem [shape: f32[8,128], index: 5, kind: output, shape index: {}]
  %s6 = sld [smem:[#allocation0]]
  $region30: #{_lambda_.1} parent=0
    _
  %s8 = ssub.s32 1, %s6
  %s9 = scalar_select 0, %s8, %s6
  // Predicated region
  $region2: #{_lambda_.1} parent=0 // pred_check
    _
  $region3: #{_lambda_.1} parent=0 // pred_check_branch
    %11 = sbr.rel (0) target = $region5
  $region4: #{_lambda_.1} parent=0 // pred_region
    _
  $region5: #{_lambda_.1} parent=0 // pred_fallthru
    _
  // Predicated region
  $region6: #{_lambda_.1} parent=0 // pred_check
    _
  $region7: #{_lambda_.1} parent=0 // pred_check_branch
    %13 = sbr.rel (0) target = $region9
  $region8: #{_lambda_.1} parent=0 // pred_region
    _
  $region9: #{_lambda_.1} parent=0 // pred_fallthru
    _
  // Predicated region
  $region10: #{_lambda_.1} parent=0 // pred_check
    _
  $region11: #{_lambda_.1} parent=0 // pred_check_branch
    %15 = sbr.rel (0) target = $region13
  $region12: #{_lambda_.1} parent=0 // pred_region
    _
  $region13: #{_lambda_.1} parent=0 // pred_fallthru
    _
  // Predicated region
  $region14: #{_lambda_.1} parent=0 // pred_check
    _
  $region15: #{_lambda_.1} parent=0 // pred_check_branch
    %17 = sbr.rel (0) target = $region17
  $region16: #{_lambda_.1} parent=0 // pred_region
    _
  $region17: #{_lambda_.1} parent=0 // pred_fallthru
    _
  // Predicated region
  $region18: #{_lambda_.1} parent=0 // pred_check
    _
  $region19: #{_lambda_.1} parent=0 // pred_check_branch
    %19 = sbr.rel (0) target = $region21
  $region20: #{_lambda_.1} parent=0 // pred_region
    _
  $region21: #{_lambda_.1} parent=0 // pred_fallthru
    _
  %v21 = vld [vmem:[%s0] sm:$0xff]
  %v22 = vld [vmem:[%s0 + $0x8] sm:$0xff]
  %v23 = vld [vmem:[%s0 + $0x10] sm:$0xff]
  %v24 = vld [vmem:[%s0 + $0x18] sm:$0xff]
  %v25 = vld [vmem:[%s0 + $0x20] sm:$0xff]
  %v26 = vld [vmem:[%s0 + $0x28] sm:$0xff]
  %v27 = vld [vmem:[%s0 + $0x30] sm:$0xff]
  %v28 = vld [vmem:[%s0 + $0x38] sm:$0xff]
  %v29 = vpack.c.bf16 %v22, %v21
  %v30 = vpack.c.bf16 %v24, %v23
  %v31 = vpack.c.bf16 %v26, %v25
  %v32 = vpack.c.bf16 %v28, %v27
  %v33 = vld [vmem:[%s4] ss:$4 sm:$0x7]
  %v34 = vld [vmem:[%s4 + $0x1] sm:$0x1]
  %v35 = vlaneseq
  %v36 = vshrl.u32 %v35, 7
  %v37 = vsub.s32 0, %v36
  %v38 = vrot.slane %v34, %v37
  %v39 = vld [vmem:[%s4 + $0x2] sm:$0x1]
  %v40 = vld [vmem:[%s1] sm:$0xff]
  %v41 = vld [vmem:[%s1 + $0x8] sm:$0xf]
  %v42 = vld [vmem:[%s1 + $0xc] sm:$0xff]
  %v43 = vld [vmem:[%s1 + $0x14] sm:$0xf]
  %v44 = vld [vmem:[%s1 + $0x18] sm:$0xff]
  %v45 = vld [vmem:[%s1 + $0x20] sm:$0xf]
  %v46 = vld [vmem:[%s1 + $0x24] sm:$0xff]
  %v47 = vld [vmem:[%s1 + $0x2c] sm:$0xf]
  %v48 = vld [vmem:[%s1 + $0x30] sm:$0xff]
  %v49 = vld [vmem:[%s1 + $0x38] sm:$0xf]
  %v50 = vld [vmem:[%s1 + $0x3c] sm:$0xff]
  %v51 = vld [vmem:[%s1 + $0x44] sm:$0xf]
  %v52 = vld [vmem:[%s1 + $0x48] sm:$0xff]
  %v53 = vld [vmem:[%s1 + $0x50] sm:$0xf]
  %v54 = vld [vmem:[%s1 + $0x54] sm:$0xff]
  %v55 = vld [vmem:[%s1 + $0x5c] sm:$0xf]
  %v57 = vlaneseq
  %v58 = vshrl.u32 %v57, 7
  %v59 = vsub.s32 0, %v58
  %v60 = vrot.slane %v33, %v59
  %v61 = vlaneseq
  %v62 = vshrl.u32 %v61, 7
  %v63 = vsub.s32 1, %v62
  %v64 = vrot.slane %v33, %v63
  %v65 = vlaneseq
  %v66 = vshrl.u32 %v65, 7
  %v67 = vsub.s32 2, %v66
  %v68 = vrot.slane %v33, %v67
  %v88 = vunpack.c.l.b16 %v40
  %v89 = vunpack.c.h.b16 %v40
  %v90 = vunpack.c.l.b16 %v41
  %v91 = vunpack.c.l.b16 %v42
  %v92 = vunpack.c.h.b16 %v42
  %v93 = vunpack.c.l.b16 %v43
  %v94 = vunpack.c.l.b16 %v44
  %v95 = vunpack.c.h.b16 %v44
  %v96 = vunpack.c.l.b16 %v45
  %v97 = vunpack.c.l.b16 %v46
  %v98 = vunpack.c.h.b16 %v46
  %v99 = vunpack.c.l.b16 %v47
  %v100 = vunpack.c.l.b16 %v48
  %v101 = vunpack.c.h.b16 %v48
  %v102 = vunpack.c.l.b16 %v49
  %v103 = vunpack.c.l.b16 %v50
  %v104 = vunpack.c.h.b16 %v50
  %v105 = vunpack.c.l.b16 %v51
  %v106 = vunpack.c.l.b16 %v52
  %v107 = vunpack.c.h.b16 %v52
  %v108 = vunpack.c.l.b16 %v53
  %v109 = vunpack.c.l.b16 %v54
  %v110 = vunpack.c.h.b16 %v54
  %v111 = vunpack.c.l.b16 %v55
  %v112 = vpack.c.b16 %v91, %v88
  %v113 = vpack.c.b16 %v92, %v89
  %v114 = vpack.c.b16 %v93, %v90
  %v115 = vpack.c.b16 %v97, %v94
  %v116 = vpack.c.b16 %v98, %v95
  %v117 = vpack.c.b16 %v99, %v96
  %v118 = vpack.c.b16 %v103, %v100
  %v119 = vpack.c.b16 %v104, %v101
  %v120 = vpack.c.b16 %v105, %v102
  %v121 = vpack.c.b16 %v109, %v106
  %v122 = vpack.c.b16 %v110, %v107
  %v123 = vpack.c.b16 %v111, %v108
  %vm136 = vcmask 523264
  %v138 = vsel %vm136, %v29, 0
  %v141 = vsel %vm136, %v30, 0
  %v144 = vsel %vm136, %v31, 0
  %v147 = vsel %vm136, %v32, 0
  %149 = vmatprep.subr.bf16.mxu0 %v113
  %150 = vmatpush1.bf16.msra.mxu0 %v112
  %151 = vmatprep.subr.bf16.mxu0 %v116
  %152 = vmatpush1.bf16.msra.mxu0 %v115
  %153 = vmatprep.subr.bf16.mxu0 %v119
  %154 = vmatpush1.bf16.msra.mxu0 %v118
  %155 = vmatprep.subr.bf16.mxu0 %v122
  %156 = vmatpush1.bf16.msra.mxu0 %v121
  %157 = vmatprep.subr.bf16.mxu0 0
  %158 = vmatpush1.bf16.msra.mxu0 0
  %159 = vmatprep.subr.bf16.mxu0 0
  %160 = vmatpush1.bf16.msra.mxu0 0
  %161 = vmatprep.subr.bf16.mxu0 0
  %162 = vmatpush1.bf16.msra.mxu0 0
  %163 = vmatprep.subr.bf16.mxu0 0
  %164 = vmatpush1.bf16.msra.mxu0 0
  %165 = vmatprep.subr.bf16.mxu0 0
  %166 = vmatpush1.bf16.msra.mxu0 0
  %167 = vmatprep.subr.bf16.mxu0 0
  %168 = vmatpush1.bf16.msra.mxu0 0
  %169 = vmatprep.subr.bf16.mxu0 0
  %170 = vmatpush1.bf16.msra.mxu0 0
  %171 = vmatprep.subr.bf16.mxu0 0
  %172 = vmatpush1.bf16.msra.mxu0 0
  %173 = vmatprep.subr.bf16.mxu0 0
  %174 = vmatpush1.bf16.msra.mxu0 0
  %175 = vmatprep.subr.bf16.mxu0 0
  %176 = vmatpush1.bf16.msra.mxu0 0
  %177 = vmatprep.subr.bf16.mxu0 0
  %178 = vmatpush1.bf16.msra.mxu0 0
  %179 = vmatprep.subr.bf16.mxu0 0
  %180 = vmatpush1.bf16.msra.mxu0 0
  %181 = vmatprep.mubr.bf16.mxu0 0
  %182 = vmatmul.mubr.bf16.gmra.mrb[0].mxu0 %v138
  %v183 = vpop.f32.mrb[0].mxu0
  %v184 = vadd.f32 %v60, %v183
  %v185 = vpop.f32.mrb[0].mxu0
  %v186 = vadd.f32 %v64, %v185
  %v187 = vpop.f32.mrb[0].mxu0
  %v188 = vadd.f32 %v60, %v187
  %v189 = vpop.f32.mrb[0].mxu0
  %v190 = vadd.f32 %v64, %v189
  %191 = vmatprep.mubr.bf16.mxu0 0
  %192 = vmatmul.mubr.bf16.gmra.mrb[0].mxu0 %v141
  %v193 = vpop.f32.mrb[0].mxu0
  %v194 = vadd.f32 %v60, %v193
  %v195 = vpop.f32.mrb[0].mxu0
  %v196 = vadd.f32 %v64, %v195
  %v197 = vpop.f32.mrb[0].mxu0
  %v198 = vadd.f32 %v60, %v197
  %v199 = vpop.f32.mrb[0].mxu0
  %v200 = vadd.f32 %v64, %v199
  %201 = vmatprep.mubr.bf16.mxu0 0
  %202 = vmatmul.mubr.bf16.gmra.mrb[0].mxu0 %v144
  %v203 = vpop.f32.mrb[0].mxu0
  %v204 = vadd.f32 %v60, %v203
  %v205 = vpop.f32.mrb[0].mxu0
  %v206 = vadd.f32 %v64, %v205
  %v207 = vpop.f32.mrb[0].mxu0
  %v208 = vadd.f32 %v60, %v207
  %v209 = vpop.f32.mrb[0].mxu0
  %v210 = vadd.f32 %v64, %v209
  %211 = vmatprep.mubr.bf16.mxu0 0
  %212 = vmatmul.mubr.bf16.gmra.mrb[0].mxu0 %v147
  %v213 = vpop.f32.mrb[0].mxu0
  %v214 = vadd.f32 %v60, %v213
  %v215 = vpop.f32.mrb[0].mxu0
  %v216 = vadd.f32 %v64, %v215
  %v217 = vpop.f32.mrb[0].mxu0
  %v218 = vadd.f32 %v60, %v217
  %v219 = vpop.f32.mrb[0].mxu0
  %v220 = vadd.f32 %v64, %v219
  %221 = vdwg.mxu0
  %222 = vmatprep.subr.bf16.mxu0 0
  %223 = vmatpush1.bf16.msra.mxu0 %v114
  %224 = vmatprep.subr.bf16.mxu0 0
  %225 = vmatpush1.bf16.msra.mxu0 %v117
  %226 = vmatprep.subr.bf16.mxu0 0
  %227 = vmatpush1.bf16.msra.mxu0 %v120
  %228 = vmatprep.subr.bf16.mxu0 0
  %229 = vmatpush1.bf16.msra.mxu0 %v123
  %230 = vmatprep.subr.bf16.mxu0 0
  %231 = vmatpush1.bf16.msra.mxu0 0
  %232 = vmatprep.subr.bf16.mxu0 0
  %233 = vmatpush1.bf16.msra.mxu0 0
  %234 = vmatprep.subr.bf16.mxu0 0
  %235 = vmatpush1.bf16.msra.mxu0 0
  %236 = vmatprep.subr.bf16.mxu0 0
  %237 = vmatpush1.bf16.msra.mxu0 0
  %238 = vmatprep.subr.bf16.mxu0 0
  %239 = vmatpush1.bf16.msra.mxu0 0
  %240 = vmatprep.subr.bf16.mxu0 0
  %241 = vmatpush1.bf16.msra.mxu0 0
  %242 = vmatprep.subr.bf16.mxu0 0
  %243 = vmatpush1.bf16.msra.mxu0 0
  %244 = vmatprep.subr.bf16.mxu0 0
  %245 = vmatpush1.bf16.msra.mxu0 0
  %246 = vmatprep.subr.bf16.mxu0 0
  %247 = vmatpush1.bf16.msra.mxu0 0
  %248 = vmatprep.subr.bf16.mxu0 0
  %249 = vmatpush1.bf16.msra.mxu0 0
  %250 = vmatprep.subr.bf16.mxu0 0
  %251 = vmatpush1.bf16.msra.mxu0 0
  %252 = vmatprep.subr.bf16.mxu0 0
  %253 = vmatpush1.bf16.msra.mxu0 0
  %254 = vmatprep.mubr.bf16.mxu0 0
  %255 = vmatmul.mubr.bf16.gmra.mrb[0].mxu0 %v138
  %v256 = vpop.f32.mrb[0].mxu0
  %v257 = vadd.f32 %v68, %v256
  %v258 = vpop.f32.mrb[0].mxu0
  %v259 = vpop.f32.mrb[0].mxu0
  %v260 = vadd.f32 %v68, %v259
  %v261 = vpop.f32.mrb[0].mxu0
  %262 = vmatprep.mubr.bf16.mxu0 0
  %263 = vmatmul.mubr.bf16.gmra.mrb[0].mxu0 %v141
  %v264 = vpop.f32.mrb[0].mxu0
  %v265 = vadd.f32 %v68, %v264
  %v266 = vpop.f32.mrb[0].mxu0
  %v267 = vpop.f32.mrb[0].mxu0
  %v268 = vadd.f32 %v68, %v267
  %v269 = vpop.f32.mrb[0].mxu0
  %270 = vmatprep.mubr.bf16.mxu0 0
  %271 = vmatmul.mubr.bf16.gmra.mrb[0].mxu0 %v144
  %v272 = vpop.f32.mrb[0].mxu0
  %v273 = vadd.f32 %v68, %v272
  %v274 = vpop.f32.mrb[0].mxu0
  %v275 = vpop.f32.mrb[0].mxu0
  %v276 = vadd.f32 %v68, %v275
  %v277 = vpop.f32.mrb[0].mxu0
  %278 = vmatprep.mubr.bf16.mxu0 0
  %279 = vmatmul.mubr.bf16.gmra.mrb[0].mxu0 %v147
  %v280 = vpop.f32.mrb[0].mxu0
  %v281 = vadd.f32 %v68, %v280
  %v282 = vpop.f32.mrb[0].mxu0
  %v283 = vpop.f32.mrb[0].mxu0
  %v284 = vadd.f32 %v68, %v283
  %v285 = vpop.f32.mrb[0].mxu0
  %286 = vdwg.mxu0
  %v287 = vld [vmem:[%s2] sm:$0xff]
  %v288 = vld [vmem:[%s2 + $0x8] sm:$0xf]
  %v289 = vld [vmem:[%s2 + $0xc] sm:$0xff]
  %v290 = vld [vmem:[%s2 + $0x14] sm:$0xf]
  %v291 = vld [vmem:[%s2 + $0x18] sm:$0xff]
  %v292 = vld [vmem:[%s2 + $0x20] sm:$0xf]
  %v293 = vld [vmem:[%s2 + $0x24] sm:$0xff]
  %v294 = vld [vmem:[%s2 + $0x2c] sm:$0xf]
  %v295 = vld [vmem:[%s2 + $0x30] sm:$0xff]
  %v296 = vld [vmem:[%s2 + $0x38] sm:$0xf]
  %v297 = vld [vmem:[%s2 + $0x3c] sm:$0xff]
  %v298 = vld [vmem:[%s2 + $0x44] sm:$0xf]
  %v299 = vld [vmem:[%s2 + $0x48] sm:$0xff]
  %v300 = vld [vmem:[%s2 + $0x50] sm:$0xf]
  %v301 = vld [vmem:[%s2 + $0x54] sm:$0xff]
  %v302 = vld [vmem:[%s2 + $0x5c] sm:$0xf]
  %v303 = vld [vmem:[%s2 + $0x60] sm:$0xff]
  %v304 = vld [vmem:[%s2 + $0x68] sm:$0xf]
  %v305 = vld [vmem:[%s2 + $0x6c] sm:$0xff]
  %v306 = vld [vmem:[%s2 + $0x74] sm:$0xf]
  %v307 = vld [vmem:[%s2 + $0x78] sm:$0xff]
  %v308 = vld [vmem:[%s2 + $0x80] sm:$0xf]
  %v309 = vld [vmem:[%s2 + $0x84] sm:$0xff]
  %v310 = vld [vmem:[%s2 + $0x8c] sm:$0xf]
  %v311 = vld [vmem:[%s2 + $0x90] sm:$0xff]
  %v312 = vld [vmem:[%s2 + $0x98] sm:$0xf]
  %v313 = vld [vmem:[%s2 + $0x9c] sm:$0xff]
  %v314 = vld [vmem:[%s2 + $0xa4] sm:$0xf]
  %v315 = vld [vmem:[%s2 + $0xa8] sm:$0xff]
  %v316 = vld [vmem:[%s2 + $0xb0] sm:$0xf]
  %v317 = vld [vmem:[%s2 + $0xb4] sm:$0xff]
  %v318 = vld [vmem:[%s2 + $0xbc] sm:$0xf]
  %v351 = vunpack.c.l.b16 %v287
  %v352 = vunpack.c.h.b16 %v287
  %v353 = vunpack.c.l.b16 %v288
  %v354 = vunpack.c.l.b16 %v289
  %v355 = vunpack.c.h.b16 %v289
  %v356 = vunpack.c.l.b16 %v290
  %v357 = vunpack.c.l.b16 %v291
  %v358 = vunpack.c.h.b16 %v291
  %v359 = vunpack.c.l.b16 %v292
  %v360 = vunpack.c.l.b16 %v293
  %v361 = vunpack.c.h.b16 %v293
  %v362 = vunpack.c.l.b16 %v294
  %v363 = vunpack.c.l.b16 %v295
  %v364 = vunpack.c.h.b16 %v295
  %v365 = vunpack.c.l.b16 %v296
  %v366 = vunpack.c.l.b16 %v297
  %v367 = vunpack.c.h.b16 %v297
  %v368 = vunpack.c.l.b16 %v298
  %v369 = vunpack.c.l.b16 %v299
  %v370 = vunpack.c.h.b16 %v299
  %v371 = vunpack.c.l.b16 %v300
  %v372 = vunpack.c.l.b16 %v301
  %v373 = vunpack.c.h.b16 %v301
  %v374 = vunpack.c.l.b16 %v302
  %v375 = vunpack.c.l.b16 %v303
  %v376 = vunpack.c.h.b16 %v303
  %v377 = vunpack.c.l.b16 %v304
  %v378 = vunpack.c.l.b16 %v305
  %v379 = vunpack.c.h.b16 %v305
  %v380 = vunpack.c.l.b16 %v306
  %v381 = vunpack.c.l.b16 %v307
  %v382 = vunpack.c.h.b16 %v307
  %v383 = vunpack.c.l.b16 %v308
  %v384 = vunpack.c.l.b16 %v309
  %v385 = vunpack.c.h.b16 %v309
  %v386 = vunpack.c.l.b16 %v310
  %v387 = vunpack.c.l.b16 %v311
  %v388 = vunpack.c.h.b16 %v311
  %v389 = vunpack.c.l.b16 %v312
  %v390 = vunpack.c.l.b16 %v313
  %v391 = vunpack.c.h.b16 %v313
  %v392 = vunpack.c.l.b16 %v314
  %v393 = vunpack.c.l.b16 %v315
  %v394 = vunpack.c.h.b16 %v315
  %v395 = vunpack.c.l.b16 %v316
  %v396 = vunpack.c.l.b16 %v317
  %v397 = vunpack.c.h.b16 %v317
  %v398 = vunpack.c.l.b16 %v318
  %v399 = vpack.c.b16 %v354, %v351
  %v400 = vpack.c.b16 %v355, %v352
  %v401 = vpack.c.b16 %v356, %v353
  %v402 = vpack.c.b16 %v360, %v357
  %v403 = vpack.c.b16 %v361, %v358
  %v404 = vpack.c.b16 %v362, %v359
  %v405 = vpack.c.b16 %v366, %v363
  %v406 = vpack.c.b16 %v367, %v364
  %v407 = vpack.c.b16 %v368, %v365
  %v408 = vpack.c.b16 %v372, %v369
  %v409 = vpack.c.b16 %v373, %v370
  %v410 = vpack.c.b16 %v374, %v371
  %v411 = vpack.c.b16 %v378, %v375
  %v412 = vpack.c.b16 %v379, %v376
  %v413 = vpack.c.b16 %v380, %v377
  %v414 = vpack.c.b16 %v384, %v381
  %v415 = vpack.c.b16 %v385, %v382
  %v416 = vpack.c.b16 %v386, %v383
  %v417 = vpack.c.b16 %v390, %v387
  %v418 = vpack.c.b16 %v391, %v388
  %v419 = vpack.c.b16 %v392, %v389
  %v420 = vpack.c.b16 %v396, %v393
  %v421 = vpack.c.b16 %v397, %v394
  %v422 = vpack.c.b16 %v398, %v395
  %447 = vmatprep.subr.bf16.mxu0 %v400
  %448 = vmatpush1.bf16.msra.mxu0 %v399
  %449 = vmatprep.subr.bf16.mxu0 %v403
  %450 = vmatpush1.bf16.msra.mxu0 %v402
  %451 = vmatprep.subr.bf16.mxu0 %v406
  %452 = vmatpush1.bf16.msra.mxu0 %v405
  %453 = vmatprep.subr.bf16.mxu0 %v409
  %454 = vmatpush1.bf16.msra.mxu0 %v408
  %455 = vmatprep.subr.bf16.mxu0 %v412
  %456 = vmatpush1.bf16.msra.mxu0 %v411
  %457 = vmatprep.subr.bf16.mxu0 %v415
  %458 = vmatpush1.bf16.msra.mxu0 %v414
  %459 = vmatprep.subr.bf16.mxu0 %v418
  %460 = vmatpush1.bf16.msra.mxu0 %v417
  %461 = vmatprep.subr.bf16.mxu0 %v421
  %462 = vmatpush1.bf16.msra.mxu0 %v420
  %463 = vmatprep.subr.bf16.mxu0 0
  %464 = vmatpush1.bf16.msra.mxu0 0
  %465 = vmatprep.subr.bf16.mxu0 0
  %466 = vmatpush1.bf16.msra.mxu0 0
  %467 = vmatprep.subr.bf16.mxu0 0
  %468 = vmatpush1.bf16.msra.mxu0 0
  %469 = vmatprep.subr.bf16.mxu0 0
  %470 = vmatpush1.bf16.msra.mxu0 0
  %471 = vmatprep.subr.bf16.mxu0 0
  %472 = vmatpush1.bf16.msra.mxu0 0
  %473 = vmatprep.subr.bf16.mxu0 0
  %474 = vmatpush1.bf16.msra.mxu0 0
  %475 = vmatprep.subr.bf16.mxu0 0
  %476 = vmatpush1.bf16.msra.mxu0 0
  %477 = vmatprep.subr.bf16.mxu0 0
  %478 = vmatpush1.bf16.msra.mxu0 0
  %479 = vmatprep.mubr.bf16.mxu0 0
  %480 = vmatmul.mubr.bf16.gmra.mrb[0].mxu0 0
  %v481 = vpop.f32.mrb[0].mxu0
  %v482 = vadd.f32 0.0, %v481
  %v483 = vpop.f32.mrb[0].mxu0
  %v484 = vadd.f32 0.0, %v483
  %v485 = vpop.f32.mrb[0].mxu0
  %v486 = vpop.f32.mrb[0].mxu0
  %487 = vdwg.mxu0
  %488 = vmatprep.subr.bf16.mxu0 0
  %489 = vmatpush1.bf16.msra.mxu0 %v401
  %490 = vmatprep.subr.bf16.mxu0 0
  %491 = vmatpush1.bf16.msra.mxu0 %v404
  %492 = vmatprep.subr.bf16.mxu0 0
  %493 = vmatpush1.bf16.msra.mxu0 %v407
  %494 = vmatprep.subr.bf16.mxu0 0
  %495 = vmatpush1.bf16.msra.mxu0 %v410
  %496 = vmatprep.subr.bf16.mxu0 0
  %497 = vmatpush1.bf16.msra.mxu0 %v413
  %498 = vmatprep.subr.bf16.mxu0 0
  %499 = vmatpush1.bf16.msra.mxu0 %v416
  %500 = vmatprep.subr.bf16.mxu0 0
  %501 = vmatpush1.bf16.msra.mxu0 %v419
  %502 = vmatprep.subr.bf16.mxu0 0
  %503 = vmatpush1.bf16.msra.mxu0 %v422
  %504 = vmatprep.subr.bf16.mxu0 0
  %505 = vmatpush1.bf16.msra.mxu0 0
  %506 = vmatprep.subr.bf16.mxu0 0
  %507 = vmatpush1.bf16.msra.mxu0 0
  %508 = vmatprep.subr.bf16.mxu0 0
  %509 = vmatpush1.bf16.msra.mxu0 0
  %510 = vmatprep.subr.bf16.mxu0 0
  %511 = vmatpush1.bf16.msra.mxu0 0
  %512 = vmatprep.subr.bf16.mxu0 0
  %513 = vmatpush1.bf16.msra.mxu0 0
  %514 = vmatprep.subr.bf16.mxu0 0
  %515 = vmatpush1.bf16.msra.mxu0 0
  %516 = vmatprep.subr.bf16.mxu0 0
  %517 = vmatpush1.bf16.msra.mxu0 0
  %518 = vmatprep.subr.bf16.mxu0 0
  %519 = vmatpush1.bf16.msra.mxu0 0
  %520 = vmatprep.mubr.bf16.mxu0 0
  %521 = vmatmul.mubr.bf16.gmra.mrb[0].mxu0 0
  %v522 = vpop.f32.mrb[0].mxu0
  %v523 = vadd.f32 0.0, %v522
  %v524 = vpop.f32.mrb[0].mxu0
  %v525 = vpop.f32.mrb[0].mxu0
  %v526 = vpop.f32.mrb[0].mxu0
  %527 = vdwg.mxu0
  %v528 = vadd.f32 %v184, %v482
  %v529 = vxor.u32 %v528, 2147483648
  %v530 = vmul.f32 %v529, 1.442695
  %v531 = vpow.pop %v530
  %v532 = vadd.f32 %v531, 1.0
  %v533 = vrcp.pop %v532
  %v534 = vmul.f32 1.0, %v533
  %v535 = vadd.f32 %v186, %v484
  %v536 = vxor.u32 %v535, 2147483648
  %v537 = vmul.f32 %v536, 1.442695
  %v538 = vpow.pop %v537
  %v539 = vadd.f32 %v538, 1.0
  %v540 = vrcp.pop %v539
  %v541 = vmul.f32 1.0, %v540
  %v542 = vadd.f32 %v523, %v38
  %v543 = vmul.f32 %v534, %v542
  %v544 = vadd.f32 %v257, %v543
  %v545 = vtanh.pop %v544
  %v546 = vsub.f32 1.0, %v541
  %v547 = vmul.f32 %v546, %v545
  %v548 = vmul.f32 %v541, 0.0
  %v549 = vadd.f32 %v547, %v548
  %v550 = vmax.f32 %v549, 0.0
  %v551 = vmax.f32 %v21, 0.0
  %v552 = vpack.c.bf16 %v549, %v549
  %553 = vmatprep.subr.bf16.mxu0 %v400
  %554 = vmatpush1.bf16.msra.mxu0 %v399
  %555 = vmatprep.subr.bf16.mxu0 %v403
  %556 = vmatpush1.bf16.msra.mxu0 %v402
  %557 = vmatprep.subr.bf16.mxu0 %v406
  %558 = vmatpush1.bf16.msra.mxu0 %v405
  %559 = vmatprep.subr.bf16.mxu0 %v409
  %560 = vmatpush1.bf16.msra.mxu0 %v408
  %561 = vmatprep.subr.bf16.mxu0 %v412
  %562 = vmatpush1.bf16.msra.mxu0 %v411
  %563 = vmatprep.subr.bf16.mxu0 %v415
  %564 = vmatpush1.bf16.msra.mxu0 %v414
  %565 = vmatprep.subr.bf16.mxu0 %v418
  %566 = vmatpush1.bf16.msra.mxu0 %v417
  %567 = vmatprep.subr.bf16.mxu0 %v421
  %568 = vmatpush1.bf16.msra.mxu0 %v420
  %569 = vmatprep.subr.bf16.mxu0 0
  %570 = vmatpush1.bf16.msra.mxu0 0
  %571 = vmatprep.subr.bf16.mxu0 0
  %572 = vmatpush1.bf16.msra.mxu0 0
  %573 = vmatprep.subr.bf16.mxu0 0
  %574 = vmatpush1.bf16.msra.mxu0 0
  %575 = vmatprep.subr.bf16.mxu0 0
  %576 = vmatpush1.bf16.msra.mxu0 0
  %577 = vmatprep.subr.bf16.mxu0 0
  %578 = vmatpush1.bf16.msra.mxu0 0
  %579 = vmatprep.subr.bf16.mxu0 0
  %580 = vmatpush1.bf16.msra.mxu0 0
  %581 = vmatprep.subr.bf16.mxu0 0
  %582 = vmatpush1.bf16.msra.mxu0 0
  %583 = vmatprep.subr.bf16.mxu0 0
  %584 = vmatpush1.bf16.msra.mxu0 0
  %585 = vmatprep.mubr.bf16.mxu0 0
  %586 = vmatmul.mubr.bf16.gmra.mrb[0].mxu0 %v552
  %v587 = vpop.f32.mrb[0].mxu0
  %v588 = vadd.f32 0.0, %v587
  %v589 = vpop.f32.mrb[0].mxu0
  %v590 = vadd.f32 0.0, %v589
  %v591 = vpop.f32.mrb[0].mxu0
  %v592 = vpop.f32.mrb[0].mxu0
  %593 = vdwg.mxu0
  %594 = vmatprep.subr.bf16.mxu0 0
  %595 = vmatpush1.bf16.msra.mxu0 %v401
  %596 = vmatprep.subr.bf16.mxu0 0
  %597 = vmatpush1.bf16.msra.mxu0 %v404
  %598 = vmatprep.subr.bf16.mxu0 0
  %599 = vmatpush1.bf16.msra.mxu0 %v407
  %600 = vmatprep.subr.bf16.mxu0 0
  %601 = vmatpush1.bf16.msra.mxu0 %v410
  %602 = vmatprep.subr.bf16.mxu0 0
  %603 = vmatpush1.bf16.msra.mxu0 %v413
  %604 = vmatprep.subr.bf16.mxu0 0
  %605 = vmatpush1.bf16.msra.mxu0 %v416
  %606 = vmatprep.subr.bf16.mxu0 0
  %607 = vmatpush1.bf16.msra.mxu0 %v419
  %608 = vmatprep.subr.bf16.mxu0 0
  %609 = vmatpush1.bf16.msra.mxu0 %v422
  %610 = vmatprep.subr.bf16.mxu0 0
  %611 = vmatpush1.bf16.msra.mxu0 0
  %612 = vmatprep.subr.bf16.mxu0 0
  %613 = vmatpush1.bf16.msra.mxu0 0
  %614 = vmatprep.subr.bf16.mxu0 0
  %615 = vmatpush1.bf16.msra.mxu0 0
  %616 = vmatprep.subr.bf16.mxu0 0
  %617 = vmatpush1.bf16.msra.mxu0 0
  %618 = vmatprep.subr.bf16.mxu0 0
  %619 = vmatpush1.bf16.msra.mxu0 0
  %620 = vmatprep.subr.bf16.mxu0 0
  %621 = vmatpush1.bf16.msra.mxu0 0
  %622 = vmatprep.subr.bf16.mxu0 0
  %623 = vmatpush1.bf16.msra.mxu0 0
  %624 = vmatprep.subr.bf16.mxu0 0
  %625 = vmatpush1.bf16.msra.mxu0 0
  %626 = vmatprep.mubr.bf16.mxu0 0
  %627 = vmatmul.mubr.bf16.gmra.mrb[0].mxu0 %v552
  %v628 = vpop.f32.mrb[0].mxu0
  %v629 = vadd.f32 0.0, %v628
  %v630 = vpop.f32.mrb[0].mxu0
  %v631 = vpop.f32.mrb[0].mxu0
  %v632 = vpop.f32.mrb[0].mxu0
  %633 = vdwg.mxu0
  %v634 = vadd.f32 %v188, %v588
  %v635 = vxor.u32 %v634, 2147483648
  %v636 = vmul.f32 %v635, 1.442695
  %v637 = vpow.pop %v636
  %v638 = vadd.f32 %v637, 1.0
  %v639 = vrcp.pop %v638
  %v640 = vmul.f32 1.0, %v639
  %v641 = vadd.f32 %v190, %v590
  %v642 = vxor.u32 %v641, 2147483648
  %v643 = vmul.f32 %v642, 1.442695
  %v644 = vpow.pop %v643
  %v645 = vadd.f32 %v644, 1.0
  %v646 = vrcp.pop %v645
  %v647 = vmul.f32 1.0, %v646
  %v648 = vadd.f32 %v629, %v38
  %v649 = vmul.f32 %v640, %v648
  %v650 = vadd.f32 %v260, %v649
  %v651 = vtanh.pop %v650
  %v652 = vsub.f32 1.0, %v647
  %v653 = vmul.f32 %v652, %v651
  %v654 = vmul.f32 %v647, %v549
  %v655 = vadd.f32 %v653, %v654
  %v656 = vmax.f32 %v550, %v655
  %v657 = vmax.f32 %v551, %v22
  %v658 = vpack.c.bf16 %v655, %v655
  %659 = vmatprep.subr.bf16.mxu0 %v400
  %660 = vmatpush1.bf16.msra.mxu0 %v399
  %661 = vmatprep.subr.bf16.mxu0 %v403
  %662 = vmatpush1.bf16.msra.mxu0 %v402
  %663 = vmatprep.subr.bf16.mxu0 %v406
  %664 = vmatpush1.bf16.msra.mxu0 %v405
  %665 = vmatprep.subr.bf16.mxu0 %v409
  %666 = vmatpush1.bf16.msra.mxu0 %v408
  %667 = vmatprep.subr.bf16.mxu0 %v412
  %668 = vmatpush1.bf16.msra.mxu0 %v411
  %669 = vmatprep.subr.bf16.mxu0 %v415
  %670 = vmatpush1.bf16.msra.mxu0 %v414
  %671 = vmatprep.subr.bf16.mxu0 %v418
  %672 = vmatpush1.bf16.msra.mxu0 %v417
  %673 = vmatprep.subr.bf16.mxu0 %v421
  %674 = vmatpush1.bf16.msra.mxu0 %v420
  %675 = vmatprep.subr.bf16.mxu0 0
  %676 = vmatpush1.bf16.msra.mxu0 0
  %677 = vmatprep.subr.bf16.mxu0 0
  %678 = vmatpush1.bf16.msra.mxu0 0
  %679 = vmatprep.subr.bf16.mxu0 0
  %680 = vmatpush1.bf16.msra.mxu0 0
  %681 = vmatprep.subr.bf16.mxu0 0
  %682 = vmatpush1.bf16.msra.mxu0 0
  %683 = vmatprep.subr.bf16.mxu0 0
  %684 = vmatpush1.bf16.msra.mxu0 0
  %685 = vmatprep.subr.bf16.mxu0 0
  %686 = vmatpush1.bf16.msra.mxu0 0
  %687 = vmatprep.subr.bf16.mxu0 0
  %688 = vmatpush1.bf16.msra.mxu0 0
  %689 = vmatprep.subr.bf16.mxu0 0
  %690 = vmatpush1.bf16.msra.mxu0 0
  %691 = vmatprep.mubr.bf16.mxu0 0
  %692 = vmatmul.mubr.bf16.gmra.mrb[0].mxu0 %v658
  %v693 = vpop.f32.mrb[0].mxu0
  %v694 = vadd.f32 0.0, %v693
  %v695 = vpop.f32.mrb[0].mxu0
  %v696 = vadd.f32 0.0, %v695
  %v697 = vpop.f32.mrb[0].mxu0
  %v698 = vpop.f32.mrb[0].mxu0
  %699 = vdwg.mxu0
  %700 = vmatprep.subr.bf16.mxu0 0
  %701 = vmatpush1.bf16.msra.mxu0 %v401
  %702 = vmatprep.subr.bf16.mxu0 0
  %703 = vmatpush1.bf16.msra.mxu0 %v404
  %704 = vmatprep.subr.bf16.mxu0 0
  %705 = vmatpush1.bf16.msra.mxu0 %v407
  %706 = vmatprep.subr.bf16.mxu0 0
  %707 = vmatpush1.bf16.msra.mxu0 %v410
  %708 = vmatprep.subr.bf16.mxu0 0
  %709 = vmatpush1.bf16.msra.mxu0 %v413
  %710 = vmatprep.subr.bf16.mxu0 0
  %711 = vmatpush1.bf16.msra.mxu0 %v416
  %712 = vmatprep.subr.bf16.mxu0 0
  %713 = vmatpush1.bf16.msra.mxu0 %v419
  %714 = vmatprep.subr.bf16.mxu0 0
  %715 = vmatpush1.bf16.msra.mxu0 %v422
  %716 = vmatprep.subr.bf16.mxu0 0
  %717 = vmatpush1.bf16.msra.mxu0 0
  %718 = vmatprep.subr.bf16.mxu0 0
  %719 = vmatpush1.bf16.msra.mxu0 0
  %720 = vmatprep.subr.bf16.mxu0 0
  %721 = vmatpush1.bf16.msra.mxu0 0
  %722 = vmatprep.subr.bf16.mxu0 0
  %723 = vmatpush1.bf16.msra.mxu0 0
  %724 = vmatprep.subr.bf16.mxu0 0
  %725 = vmatpush1.bf16.msra.mxu0 0
  %726 = vmatprep.subr.bf16.mxu0 0
  %727 = vmatpush1.bf16.msra.mxu0 0
  %728 = vmatprep.subr.bf16.mxu0 0
  %729 = vmatpush1.bf16.msra.mxu0 0
  %730 = vmatprep.subr.bf16.mxu0 0
  %731 = vmatpush1.bf16.msra.mxu0 0
  %732 = vmatprep.mubr.bf16.mxu0 0
  %733 = vmatmul.mubr.bf16.gmra.mrb[0].mxu0 %v658
  %v734 = vpop.f32.mrb[0].mxu0
  %v735 = vadd.f32 0.0, %v734
  %v736 = vpop.f32.mrb[0].mxu0
  %v737 = vpop.f32.mrb[0].mxu0
  %v738 = vpop.f32.mrb[0].mxu0
  %739 = vdwg.mxu0
  %v740 = vadd.f32 %v194, %v694
  %v741 = vxor.u32 %v740, 2147483648
  %v742 = vmul.f32 %v741, 1.442695
  %v743 = vpow.pop %v742
  %v744 = vadd.f32 %v743, 1.0
  %v745 = vrcp.pop %v744
  %v746 = vmul.f32 1.0, %v745
  %v747 = vadd.f32 %v196, %v696
  %v748 = vxor.u32 %v747, 2147483648
  %v749 = vmul.f32 %v748, 1.442695
  %v750 = vpow.pop %v749
  %v751 = vadd.f32 %v750, 1.0
  %v752 = vrcp.pop %v751
  %v753 = vmul.f32 1.0, %v752
  %v754 = vadd.f32 %v735, %v38
  %v755 = vmul.f32 %v746, %v754
  %v756 = vadd.f32 %v265, %v755
  %v757 = vtanh.pop %v756
  %v758 = vsub.f32 1.0, %v753
  %v759 = vmul.f32 %v758, %v757
  %v760 = vmul.f32 %v753, %v655
  %v761 = vadd.f32 %v759, %v760
  %v762 = vmax.f32 %v656, %v761
  %v763 = vmax.f32 %v657, %v23
  %v764 = vpack.c.bf16 %v761, %v761
  %765 = vmatprep.subr.bf16.mxu0 %v400
  %766 = vmatpush1.bf16.msra.mxu0 %v399
  %767 = vmatprep.subr.bf16.mxu0 %v403
  %768 = vmatpush1.bf16.msra.mxu0 %v402
  %769 = vmatprep.subr.bf16.mxu0 %v406
  %770 = vmatpush1.bf16.msra.mxu0 %v405
  %771 = vmatprep.subr.bf16.mxu0 %v409
  %772 = vmatpush1.bf16.msra.mxu0 %v408
  %773 = vmatprep.subr.bf16.mxu0 %v412
  %774 = vmatpush1.bf16.msra.mxu0 %v411
  %775 = vmatprep.subr.bf16.mxu0 %v415
  %776 = vmatpush1.bf16.msra.mxu0 %v414
  %777 = vmatprep.subr.bf16.mxu0 %v418
  %778 = vmatpush1.bf16.msra.mxu0 %v417
  %779 = vmatprep.subr.bf16.mxu0 %v421
  %780 = vmatpush1.bf16.msra.mxu0 %v420
  %781 = vmatprep.subr.bf16.mxu0 0
  %782 = vmatpush1.bf16.msra.mxu0 0
  %783 = vmatprep.subr.bf16.mxu0 0
  %784 = vmatpush1.bf16.msra.mxu0 0
  %785 = vmatprep.subr.bf16.mxu0 0
  %786 = vmatpush1.bf16.msra.mxu0 0
  %787 = vmatprep.subr.bf16.mxu0 0
  %788 = vmatpush1.bf16.msra.mxu0 0
  %789 = vmatprep.subr.bf16.mxu0 0
  %790 = vmatpush1.bf16.msra.mxu0 0
  %791 = vmatprep.subr.bf16.mxu0 0
  %792 = vmatpush1.bf16.msra.mxu0 0
  %793 = vmatprep.subr.bf16.mxu0 0
  %794 = vmatpush1.bf16.msra.mxu0 0
  %795 = vmatprep.subr.bf16.mxu0 0
  %796 = vmatpush1.bf16.msra.mxu0 0
  %797 = vmatprep.mubr.bf16.mxu0 0
  %798 = vmatmul.mubr.bf16.gmra.mrb[0].mxu0 %v764
  %v799 = vpop.f32.mrb[0].mxu0
  %v800 = vadd.f32 0.0, %v799
  %v801 = vpop.f32.mrb[0].mxu0
  %v802 = vadd.f32 0.0, %v801
  %v803 = vpop.f32.mrb[0].mxu0
  %v804 = vpop.f32.mrb[0].mxu0
  %805 = vdwg.mxu0
  %806 = vmatprep.subr.bf16.mxu0 0
  %807 = vmatpush1.bf16.msra.mxu0 %v401
  %808 = vmatprep.subr.bf16.mxu0 0
  %809 = vmatpush1.bf16.msra.mxu0 %v404
  %810 = vmatprep.subr.bf16.mxu0 0
  %811 = vmatpush1.bf16.msra.mxu0 %v407
  %812 = vmatprep.subr.bf16.mxu0 0
  %813 = vmatpush1.bf16.msra.mxu0 %v410
  %814 = vmatprep.subr.bf16.mxu0 0
  %815 = vmatpush1.bf16.msra.mxu0 %v413
  %816 = vmatprep.subr.bf16.mxu0 0
  %817 = vmatpush1.bf16.msra.mxu0 %v416
  %818 = vmatprep.subr.bf16.mxu0 0
  %819 = vmatpush1.bf16.msra.mxu0 %v419
  %820 = vmatprep.subr.bf16.mxu0 0
  %821 = vmatpush1.bf16.msra.mxu0 %v422
  %822 = vmatprep.subr.bf16.mxu0 0
  %823 = vmatpush1.bf16.msra.mxu0 0
  %824 = vmatprep.subr.bf16.mxu0 0
  %825 = vmatpush1.bf16.msra.mxu0 0
  %826 = vmatprep.subr.bf16.mxu0 0
  %827 = vmatpush1.bf16.msra.mxu0 0
  %828 = vmatprep.subr.bf16.mxu0 0
  %829 = vmatpush1.bf16.msra.mxu0 0
  %830 = vmatprep.subr.bf16.mxu0 0
  %831 = vmatpush1.bf16.msra.mxu0 0
  %832 = vmatprep.subr.bf16.mxu0 0
  %833 = vmatpush1.bf16.msra.mxu0 0
  %834 = vmatprep.subr.bf16.mxu0 0
  %835 = vmatpush1.bf16.msra.mxu0 0
  %836 = vmatprep.subr.bf16.mxu0 0
  %837 = vmatpush1.bf16.msra.mxu0 0
  %838 = vmatprep.mubr.bf16.mxu0 0
  %839 = vmatmul.mubr.bf16.gmra.mrb[0].mxu0 %v764
  %v840 = vpop.f32.mrb[0].mxu0
  %v841 = vadd.f32 0.0, %v840
  %v842 = vpop.f32.mrb[0].mxu0
  %v843 = vpop.f32.mrb[0].mxu0
  %v844 = vpop.f32.mrb[0].mxu0
  %845 = vdwg.mxu0
  %v846 = vadd.f32 %v198, %v800
  %v847 = vxor.u32 %v846, 2147483648
  %v848 = vmul.f32 %v847, 1.442695
  %v849 = vpow.pop %v848
  %v850 = vadd.f32 %v849, 1.0
  %v851 = vrcp.pop %v850
  %v852 = vmul.f32 1.0, %v851
  %v853 = vadd.f32 %v200, %v802
  %v854 = vxor.u32 %v853, 2147483648
  %v855 = vmul.f32 %v854, 1.442695
  %v856 = vpow.pop %v855
  %v857 = vadd.f32 %v856, 1.0
  %v858 = vrcp.pop %v857
  %v859 = vmul.f32 1.0, %v858
  %v860 = vadd.f32 %v841, %v38
  %v861 = vmul.f32 %v852, %v860
  %v862 = vadd.f32 %v268, %v861
  %v863 = vtanh.pop %v862
  %v864 = vsub.f32 1.0, %v859
  %v865 = vmul.f32 %v864, %v863
  %v866 = vmul.f32 %v859, %v761
  %v867 = vadd.f32 %v865, %v866
  %v868 = vmax.f32 %v762, %v867
  %v869 = vmax.f32 %v763, %v24
  %v870 = vpack.c.bf16 %v867, %v867
  %871 = vmatprep.subr.bf16.mxu0 %v400
  %872 = vmatpush1.bf16.msra.mxu0 %v399
  %873 = vmatprep.subr.bf16.mxu0 %v403
  %874 = vmatpush1.bf16.msra.mxu0 %v402
  %875 = vmatprep.subr.bf16.mxu0 %v406
  %876 = vmatpush1.bf16.msra.mxu0 %v405
  %877 = vmatprep.subr.bf16.mxu0 %v409
  %878 = vmatpush1.bf16.msra.mxu0 %v408
  %879 = vmatprep.subr.bf16.mxu0 %v412
  %880 = vmatpush1.bf16.msra.mxu0 %v411
  %881 = vmatprep.subr.bf16.mxu0 %v415
  %882 = vmatpush1.bf16.msra.mxu0 %v414
  %883 = vmatprep.subr.bf16.mxu0 %v418
  %884 = vmatpush1.bf16.msra.mxu0 %v417
  %885 = vmatprep.subr.bf16.mxu0 %v421
  %886 = vmatpush1.bf16.msra.mxu0 %v420
  %887 = vmatprep.subr.bf16.mxu0 0
  %888 = vmatpush1.bf16.msra.mxu0 0
  %889 = vmatprep.subr.bf16.mxu0 0
  %890 = vmatpush1.bf16.msra.mxu0 0
  %891 = vmatprep.subr.bf16.mxu0 0
  %892 = vmatpush1.bf16.msra.mxu0 0
  %893 = vmatprep.subr.bf16.mxu0 0
  %894 = vmatpush1.bf16.msra.mxu0 0
  %895 = vmatprep.subr.bf16.mxu0 0
  %896 = vmatpush1.bf16.msra.mxu0 0
  %897 = vmatprep.subr.bf16.mxu0 0
  %898 = vmatpush1.bf16.msra.mxu0 0
  %899 = vmatprep.subr.bf16.mxu0 0
  %900 = vmatpush1.bf16.msra.mxu0 0
  %901 = vmatprep.subr.bf16.mxu0 0
  %902 = vmatpush1.bf16.msra.mxu0 0
  %903 = vmatprep.mubr.bf16.mxu0 0
  %904 = vmatmul.mubr.bf16.gmra.mrb[0].mxu0 %v870
  %v905 = vpop.f32.mrb[0].mxu0
  %v906 = vadd.f32 0.0, %v905
  %v907 = vpop.f32.mrb[0].mxu0
  %v908 = vadd.f32 0.0, %v907
  %v909 = vpop.f32.mrb[0].mxu0
  %v910 = vpop.f32.mrb[0].mxu0
  %911 = vdwg.mxu0
  %912 = vmatprep.subr.bf16.mxu0 0
  %913 = vmatpush1.bf16.msra.mxu0 %v401
  %914 = vmatprep.subr.bf16.mxu0 0
  %915 = vmatpush1.bf16.msra.mxu0 %v404
  %916 = vmatprep.subr.bf16.mxu0 0
  %917 = vmatpush1.bf16.msra.mxu0 %v407
  %918 = vmatprep.subr.bf16.mxu0 0
  %919 = vmatpush1.bf16.msra.mxu0 %v410
  %920 = vmatprep.subr.bf16.mxu0 0
  %921 = vmatpush1.bf16.msra.mxu0 %v413
  %922 = vmatprep.subr.bf16.mxu0 0
  %923 = vmatpush1.bf16.msra.mxu0 %v416
  %924 = vmatprep.subr.bf16.mxu0 0
  %925 = vmatpush1.bf16.msra.mxu0 %v419
  %926 = vmatprep.subr.bf16.mxu0 0
  %927 = vmatpush1.bf16.msra.mxu0 %v422
  %928 = vmatprep.subr.bf16.mxu0 0
  %929 = vmatpush1.bf16.msra.mxu0 0
  %930 = vmatprep.subr.bf16.mxu0 0
  %931 = vmatpush1.bf16.msra.mxu0 0
  %932 = vmatprep.subr.bf16.mxu0 0
  %933 = vmatpush1.bf16.msra.mxu0 0
  %934 = vmatprep.subr.bf16.mxu0 0
  %935 = vmatpush1.bf16.msra.mxu0 0
  %936 = vmatprep.subr.bf16.mxu0 0
  %937 = vmatpush1.bf16.msra.mxu0 0
  %938 = vmatprep.subr.bf16.mxu0 0
  %939 = vmatpush1.bf16.msra.mxu0 0
  %940 = vmatprep.subr.bf16.mxu0 0
  %941 = vmatpush1.bf16.msra.mxu0 0
  %942 = vmatprep.subr.bf16.mxu0 0
  %943 = vmatpush1.bf16.msra.mxu0 0
  %944 = vmatprep.mubr.bf16.mxu0 0
  %945 = vmatmul.mubr.bf16.gmra.mrb[0].mxu0 %v870
  %v946 = vpop.f32.mrb[0].mxu0
  %v947 = vadd.f32 0.0, %v946
  %v948 = vpop.f32.mrb[0].mxu0
  %v949 = vpop.f32.mrb[0].mxu0
  %v950 = vpop.f32.mrb[0].mxu0
  %951 = vdwg.mxu0
  %v952 = vadd.f32 %v204, %v906
  %v953 = vxor.u32 %v952, 2147483648
  %v954 = vmul.f32 %v953, 1.442695
  %v955 = vpow.pop %v954
  %v956 = vadd.f32 %v955, 1.0
  %v957 = vrcp.pop %v956
  %v958 = vmul.f32 1.0, %v957
  %v959 = vadd.f32 %v206, %v908
  %v960 = vxor.u32 %v959, 2147483648
  %v961 = vmul.f32 %v960, 1.442695
  %v962 = vpow.pop %v961
  %v963 = vadd.f32 %v962, 1.0
  %v964 = vrcp.pop %v963
  %v965 = vmul.f32 1.0, %v964
  %v966 = vadd.f32 %v947, %v38
  %v967 = vmul.f32 %v958, %v966
  %v968 = vadd.f32 %v273, %v967
  %v969 = vtanh.pop %v968
  %v970 = vsub.f32 1.0, %v965
  %v971 = vmul.f32 %v970, %v969
  %v972 = vmul.f32 %v965, %v867
  %v973 = vadd.f32 %v971, %v972
  %v974 = vmax.f32 %v868, %v973
  %v975 = vmax.f32 %v869, %v25
  %v976 = vpack.c.bf16 %v973, %v973
  %977 = vmatprep.subr.bf16.mxu0 %v400
  %978 = vmatpush1.bf16.msra.mxu0 %v399
  %979 = vmatprep.subr.bf16.mxu0 %v403
  %980 = vmatpush1.bf16.msra.mxu0 %v402
  %981 = vmatprep.subr.bf16.mxu0 %v406
  %982 = vmatpush1.bf16.msra.mxu0 %v405
  %983 = vmatprep.subr.bf16.mxu0 %v409
  %984 = vmatpush1.bf16.msra.mxu0 %v408
  %985 = vmatprep.subr.bf16.mxu0 %v412
  %986 = vmatpush1.bf16.msra.mxu0 %v411
  %987 = vmatprep.subr.bf16.mxu0 %v415
  %988 = vmatpush1.bf16.msra.mxu0 %v414
  %989 = vmatprep.subr.bf16.mxu0 %v418
  %990 = vmatpush1.bf16.msra.mxu0 %v417
  %991 = vmatprep.subr.bf16.mxu0 %v421
  %992 = vmatpush1.bf16.msra.mxu0 %v420
  %993 = vmatprep.subr.bf16.mxu0 0
  %994 = vmatpush1.bf16.msra.mxu0 0
  %995 = vmatprep.subr.bf16.mxu0 0
  %996 = vmatpush1.bf16.msra.mxu0 0
  %997 = vmatprep.subr.bf16.mxu0 0
  %998 = vmatpush1.bf16.msra.mxu0 0
  %999 = vmatprep.subr.bf16.mxu0 0
  %1000 = vmatpush1.bf16.msra.mxu0 0
  %1001 = vmatprep.subr.bf16.mxu0 0
  %1002 = vmatpush1.bf16.msra.mxu0 0
  %1003 = vmatprep.subr.bf16.mxu0 0
  %1004 = vmatpush1.bf16.msra.mxu0 0
  %1005 = vmatprep.subr.bf16.mxu0 0
  %1006 = vmatpush1.bf16.msra.mxu0 0
  %1007 = vmatprep.subr.bf16.mxu0 0
  %1008 = vmatpush1.bf16.msra.mxu0 0
  %1009 = vmatprep.mubr.bf16.mxu0 0
  %1010 = vmatmul.mubr.bf16.gmra.mrb[0].mxu0 %v976
  %v1011 = vpop.f32.mrb[0].mxu0
  %v1012 = vadd.f32 0.0, %v1011
  %v1013 = vpop.f32.mrb[0].mxu0
  %v1014 = vadd.f32 0.0, %v1013
  %v1015 = vpop.f32.mrb[0].mxu0
  %v1016 = vpop.f32.mrb[0].mxu0
  %1017 = vdwg.mxu0
  %1018 = vmatprep.subr.bf16.mxu0 0
  %1019 = vmatpush1.bf16.msra.mxu0 %v401
  %1020 = vmatprep.subr.bf16.mxu0 0
  %1021 = vmatpush1.bf16.msra.mxu0 %v404
  %1022 = vmatprep.subr.bf16.mxu0 0
  %1023 = vmatpush1.bf16.msra.mxu0 %v407
  %1024 = vmatprep.subr.bf16.mxu0 0
  %1025 = vmatpush1.bf16.msra.mxu0 %v410
  %1026 = vmatprep.subr.bf16.mxu0 0
  %1027 = vmatpush1.bf16.msra.mxu0 %v413
  %1028 = vmatprep.subr.bf16.mxu0 0
  %1029 = vmatpush1.bf16.msra.mxu0 %v416
  %1030 = vmatprep.subr.bf16.mxu0 0
  %1031 = vmatpush1.bf16.msra.mxu0 %v419
  %1032 = vmatprep.subr.bf16.mxu0 0
  %1033 = vmatpush1.bf16.msra.mxu0 %v422
  %1034 = vmatprep.subr.bf16.mxu0 0
  %1035 = vmatpush1.bf16.msra.mxu0 0
  %1036 = vmatprep.subr.bf16.mxu0 0
  %1037 = vmatpush1.bf16.msra.mxu0 0
  %1038 = vmatprep.subr.bf16.mxu0 0
  %1039 = vmatpush1.bf16.msra.mxu0 0
  %1040 = vmatprep.subr.bf16.mxu0 0
  %1041 = vmatpush1.bf16.msra.mxu0 0
  %1042 = vmatprep.subr.bf16.mxu0 0
  %1043 = vmatpush1.bf16.msra.mxu0 0
  %1044 = vmatprep.subr.bf16.mxu0 0
  %1045 = vmatpush1.bf16.msra.mxu0 0
  %1046 = vmatprep.subr.bf16.mxu0 0
  %1047 = vmatpush1.bf16.msra.mxu0 0
  %1048 = vmatprep.subr.bf16.mxu0 0
  %1049 = vmatpush1.bf16.msra.mxu0 0
  %1050 = vmatprep.mubr.bf16.mxu0 0
  %1051 = vmatmul.mubr.bf16.gmra.mrb[0].mxu0 %v976
  %v1052 = vpop.f32.mrb[0].mxu0
  %v1053 = vadd.f32 0.0, %v1052
  %v1054 = vpop.f32.mrb[0].mxu0
  %v1055 = vpop.f32.mrb[0].mxu0
  %v1056 = vpop.f32.mrb[0].mxu0
  %1057 = vdwg.mxu0
  %v1058 = vadd.f32 %v208, %v1012
  %v1059 = vxor.u32 %v1058, 2147483648
  %v1060 = vmul.f32 %v1059, 1.442695
  %v1061 = vpow.pop %v1060
  %v1062 = vadd.f32 %v1061, 1.0
  %v1063 = vrcp.pop %v1062
  %v1064 = vmul.f32 1.0, %v1063
  %v1065 = vadd.f32 %v210, %v1014
  %v1066 = vxor.u32 %v1065, 2147483648
  %v1067 = vmul.f32 %v1066, 1.442695
  %v1068 = vpow.pop %v1067
  %v1069 = vadd.f32 %v1068, 1.0
  %v1070 = vrcp.pop %v1069
  %v1071 = vmul.f32 1.0, %v1070
  %v1072 = vadd.f32 %v1053, %v38
  %v1073 = vmul.f32 %v1064, %v1072
  %v1074 = vadd.f32 %v276, %v1073
  %v1075 = vtanh.pop %v1074
  %v1076 = vsub.f32 1.0, %v1071
  %v1077 = vmul.f32 %v1076, %v1075
  %v1078 = vmul.f32 %v1071, %v973
  %v1079 = vadd.f32 %v1077, %v1078
  %v1080 = vmax.f32 %v974, %v1079
  %v1081 = vmax.f32 %v975, %v26
  %v1082 = vpack.c.bf16 %v1079, %v1079
  %1083 = vmatprep.subr.bf16.mxu0 %v400
  %1084 = vmatpush1.bf16.msra.mxu0 %v399
  %1085 = vmatprep.subr.bf16.mxu0 %v403
  %1086 = vmatpush1.bf16.msra.mxu0 %v402
  %1087 = vmatprep.subr.bf16.mxu0 %v406
  %1088 = vmatpush1.bf16.msra.mxu0 %v405
  %1089 = vmatprep.subr.bf16.mxu0 %v409
  %1090 = vmatpush1.bf16.msra.mxu0 %v408
  %1091 = vmatprep.subr.bf16.mxu0 %v412
  %1092 = vmatpush1.bf16.msra.mxu0 %v411
  %1093 = vmatprep.subr.bf16.mxu0 %v415
  %1094 = vmatpush1.bf16.msra.mxu0 %v414
  %1095 = vmatprep.subr.bf16.mxu0 %v418
  %1096 = vmatpush1.bf16.msra.mxu0 %v417
  %1097 = vmatprep.subr.bf16.mxu0 %v421
  %1098 = vmatpush1.bf16.msra.mxu0 %v420
  %1099 = vmatprep.subr.bf16.mxu0 0
  %1100 = vmatpush1.bf16.msra.mxu0 0
  %1101 = vmatprep.subr.bf16.mxu0 0
  %1102 = vmatpush1.bf16.msra.mxu0 0
  %1103 = vmatprep.subr.bf16.mxu0 0
  %1104 = vmatpush1.bf16.msra.mxu0 0
  %1105 = vmatprep.subr.bf16.mxu0 0
  %1106 = vmatpush1.bf16.msra.mxu0 0
  %1107 = vmatprep.subr.bf16.mxu0 0
  %1108 = vmatpush1.bf16.msra.mxu0 0
  %1109 = vmatprep.subr.bf16.mxu0 0
  %1110 = vmatpush1.bf16.msra.mxu0 0
  %1111 = vmatprep.subr.bf16.mxu0 0
  %1112 = vmatpush1.bf16.msra.mxu0 0
  %1113 = vmatprep.subr.bf16.mxu0 0
  %1114 = vmatpush1.bf16.msra.mxu0 0
  %1115 = vmatprep.mubr.bf16.mxu0 0
  %1116 = vmatmul.mubr.bf16.gmra.mrb[0].mxu0 %v1082
  %v1117 = vpop.f32.mrb[0].mxu0
  %v1118 = vadd.f32 0.0, %v1117
  %v1119 = vpop.f32.mrb[0].mxu0
  %v1120 = vadd.f32 0.0, %v1119
  %v1121 = vpop.f32.mrb[0].mxu0
  %v1122 = vpop.f32.mrb[0].mxu0
  %1123 = vdwg.mxu0
  %1124 = vmatprep.subr.bf16.mxu0 0
  %1125 = vmatpush1.bf16.msra.mxu0 %v401
  %1126 = vmatprep.subr.bf16.mxu0 0
  %1127 = vmatpush1.bf16.msra.mxu0 %v404
  %1128 = vmatprep.subr.bf16.mxu0 0
  %1129 = vmatpush1.bf16.msra.mxu0 %v407
  %1130 = vmatprep.subr.bf16.mxu0 0
  %1131 = vmatpush1.bf16.msra.mxu0 %v410
  %1132 = vmatprep.subr.bf16.mxu0 0
  %1133 = vmatpush1.bf16.msra.mxu0 %v413
  %1134 = vmatprep.subr.bf16.mxu0 0
  %1135 = vmatpush1.bf16.msra.mxu0 %v416
  %1136 = vmatprep.subr.bf16.mxu0 0
  %1137 = vmatpush1.bf16.msra.mxu0 %v419
  %1138 = vmatprep.subr.bf16.mxu0 0
  %1139 = vmatpush1.bf16.msra.mxu0 %v422
  %1140 = vmatprep.subr.bf16.mxu0 0
  %1141 = vmatpush1.bf16.msra.mxu0 0
  %1142 = vmatprep.subr.bf16.mxu0 0
  %1143 = vmatpush1.bf16.msra.mxu0 0
  %1144 = vmatprep.subr.bf16.mxu0 0
  %1145 = vmatpush1.bf16.msra.mxu0 0
  %1146 = vmatprep.subr.bf16.mxu0 0
  %1147 = vmatpush1.bf16.msra.mxu0 0
  %1148 = vmatprep.subr.bf16.mxu0 0
  %1149 = vmatpush1.bf16.msra.mxu0 0
  %1150 = vmatprep.subr.bf16.mxu0 0
  %1151 = vmatpush1.bf16.msra.mxu0 0
  %1152 = vmatprep.subr.bf16.mxu0 0
  %1153 = vmatpush1.bf16.msra.mxu0 0
  %1154 = vmatprep.subr.bf16.mxu0 0
  %1155 = vmatpush1.bf16.msra.mxu0 0
  %1156 = vmatprep.mubr.bf16.mxu0 0
  %1157 = vmatmul.mubr.bf16.gmra.mrb[0].mxu0 %v1082
  %v1158 = vpop.f32.mrb[0].mxu0
  %v1159 = vadd.f32 0.0, %v1158
  %v1160 = vpop.f32.mrb[0].mxu0
  %v1161 = vpop.f32.mrb[0].mxu0
  %v1162 = vpop.f32.mrb[0].mxu0
  %1163 = vdwg.mxu0
  %v1164 = vadd.f32 %v214, %v1118
  %v1165 = vxor.u32 %v1164, 2147483648
  %v1166 = vmul.f32 %v1165, 1.442695
  %v1167 = vpow.pop %v1166
  %v1168 = vadd.f32 %v1167, 1.0
  %v1169 = vrcp.pop %v1168
  %v1170 = vmul.f32 1.0, %v1169
  %v1171 = vadd.f32 %v216, %v1120
  %v1172 = vxor.u32 %v1171, 2147483648
  %v1173 = vmul.f32 %v1172, 1.442695
  %v1174 = vpow.pop %v1173
  %v1175 = vadd.f32 %v1174, 1.0
  %v1176 = vrcp.pop %v1175
  %v1177 = vmul.f32 1.0, %v1176
  %v1178 = vadd.f32 %v1159, %v38
  %v1179 = vmul.f32 %v1170, %v1178
  %v1180 = vadd.f32 %v281, %v1179
  %v1181 = vtanh.pop %v1180
  %v1182 = vsub.f32 1.0, %v1177
  %v1183 = vmul.f32 %v1182, %v1181
  %v1184 = vmul.f32 %v1177, %v1079
  %v1185 = vadd.f32 %v1183, %v1184
  %v1186 = vmax.f32 %v1080, %v1185
  %v1187 = vmax.f32 %v1081, %v27
  %v1188 = vpack.c.bf16 %v1185, %v1185
  %1189 = vmatprep.subr.bf16.mxu0 %v400
  %1190 = vmatpush1.bf16.msra.mxu0 %v399
  %1191 = vmatprep.subr.bf16.mxu0 %v403
  %1192 = vmatpush1.bf16.msra.mxu0 %v402
  %1193 = vmatprep.subr.bf16.mxu0 %v406
  %1194 = vmatpush1.bf16.msra.mxu0 %v405
  %1195 = vmatprep.subr.bf16.mxu0 %v409
  %1196 = vmatpush1.bf16.msra.mxu0 %v408
  %1197 = vmatprep.subr.bf16.mxu0 %v412
  %1198 = vmatpush1.bf16.msra.mxu0 %v411
  %1199 = vmatprep.subr.bf16.mxu0 %v415
  %1200 = vmatpush1.bf16.msra.mxu0 %v414
  %1201 = vmatprep.subr.bf16.mxu0 %v418
  %1202 = vmatpush1.bf16.msra.mxu0 %v417
  %1203 = vmatprep.subr.bf16.mxu0 %v421
  %1204 = vmatpush1.bf16.msra.mxu0 %v420
  %1205 = vmatprep.subr.bf16.mxu0 0
  %1206 = vmatpush1.bf16.msra.mxu0 0
  %1207 = vmatprep.subr.bf16.mxu0 0
  %1208 = vmatpush1.bf16.msra.mxu0 0
  %1209 = vmatprep.subr.bf16.mxu0 0
  %1210 = vmatpush1.bf16.msra.mxu0 0
  %1211 = vmatprep.subr.bf16.mxu0 0
  %1212 = vmatpush1.bf16.msra.mxu0 0
  %1213 = vmatprep.subr.bf16.mxu0 0
  %1214 = vmatpush1.bf16.msra.mxu0 0
  %1215 = vmatprep.subr.bf16.mxu0 0
  %1216 = vmatpush1.bf16.msra.mxu0 0
  %1217 = vmatprep.subr.bf16.mxu0 0
  %1218 = vmatpush1.bf16.msra.mxu0 0
  %1219 = vmatprep.subr.bf16.mxu0 0
  %1220 = vmatpush1.bf16.msra.mxu0 0
  %1221 = vmatprep.mubr.bf16.mxu0 0
  %1222 = vmatmul.mubr.bf16.gmra.mrb[0].mxu0 %v1188
  %v1223 = vpop.f32.mrb[0].mxu0
  %v1224 = vadd.f32 0.0, %v1223
  %v1225 = vpop.f32.mrb[0].mxu0
  %v1226 = vadd.f32 0.0, %v1225
  %v1227 = vpop.f32.mrb[0].mxu0
  %v1228 = vpop.f32.mrb[0].mxu0
  %1229 = vdwg.mxu0
  %1230 = vmatprep.subr.bf16.mxu0 0
  %1231 = vmatpush1.bf16.msra.mxu0 %v401
  %1232 = vmatprep.subr.bf16.mxu0 0
  %1233 = vmatpush1.bf16.msra.mxu0 %v404
  %1234 = vmatprep.subr.bf16.mxu0 0
  %1235 = vmatpush1.bf16.msra.mxu0 %v407
  %1236 = vmatprep.subr.bf16.mxu0 0
  %1237 = vmatpush1.bf16.msra.mxu0 %v410
  %1238 = vmatprep.subr.bf16.mxu0 0
  %1239 = vmatpush1.bf16.msra.mxu0 %v413
  %1240 = vmatprep.subr.bf16.mxu0 0
  %1241 = vmatpush1.bf16.msra.mxu0 %v416
  %1242 = vmatprep.subr.bf16.mxu0 0
  %1243 = vmatpush1.bf16.msra.mxu0 %v419
  %1244 = vmatprep.subr.bf16.mxu0 0
  %1245 = vmatpush1.bf16.msra.mxu0 %v422
  %1246 = vmatprep.subr.bf16.mxu0 0
  %1247 = vmatpush1.bf16.msra.mxu0 0
  %1248 = vmatprep.subr.bf16.mxu0 0
  %1249 = vmatpush1.bf16.msra.mxu0 0
  %1250 = vmatprep.subr.bf16.mxu0 0
  %1251 = vmatpush1.bf16.msra.mxu0 0
  %1252 = vmatprep.subr.bf16.mxu0 0
  %1253 = vmatpush1.bf16.msra.mxu0 0
  %1254 = vmatprep.subr.bf16.mxu0 0
  %1255 = vmatpush1.bf16.msra.mxu0 0
  %1256 = vmatprep.subr.bf16.mxu0 0
  %1257 = vmatpush1.bf16.msra.mxu0 0
  %1258 = vmatprep.subr.bf16.mxu0 0
  %1259 = vmatpush1.bf16.msra.mxu0 0
  %1260 = vmatprep.subr.bf16.mxu0 0
  %1261 = vmatpush1.bf16.msra.mxu0 0
  %1262 = vmatprep.mubr.bf16.mxu0 0
  %1263 = vmatmul.mubr.bf16.gmra.mrb[0].mxu0 %v1188
  %v1264 = vpop.f32.mrb[0].mxu0
  %v1265 = vadd.f32 0.0, %v1264
  %v1266 = vpop.f32.mrb[0].mxu0
  %v1267 = vpop.f32.mrb[0].mxu0
  %v1268 = vpop.f32.mrb[0].mxu0
  %1269 = vdwg.mxu0
  %v1270 = vadd.f32 %v218, %v1224
  %v1271 = vxor.u32 %v1270, 2147483648
  %v1272 = vmul.f32 %v1271, 1.442695
  %v1273 = vpow.pop %v1272
  %v1274 = vadd.f32 %v1273, 1.0
  %v1275 = vrcp.pop %v1274
  %v1276 = vmul.f32 1.0, %v1275
  %v1277 = vadd.f32 %v220, %v1226
  %v1278 = vxor.u32 %v1277, 2147483648
  %v1279 = vmul.f32 %v1278, 1.442695
  %v1280 = vpow.pop %v1279
  %v1281 = vadd.f32 %v1280, 1.0
  %v1282 = vrcp.pop %v1281
  %v1283 = vmul.f32 1.0, %v1282
  %v1284 = vadd.f32 %v1265, %v38
  %v1285 = vmul.f32 %v1276, %v1284
  %v1286 = vadd.f32 %v284, %v1285
  %v1287 = vtanh.pop %v1286
  %v1288 = vsub.f32 1.0, %v1283
  %v1289 = vmul.f32 %v1288, %v1287
  %v1290 = vmul.f32 %v1283, %v1185
  %v1291 = vadd.f32 %v1289, %v1290
  %v1292 = vmax.f32 %v1186, %v1291
  %v1293 = vmax.f32 %v1187, %v28
  %v1294 = vpack.c.bf16 %v1293, %v1293
  %v1295 = vld [vmem:[%s3] sm:$0xf]
  %v1296 = vld [vmem:[%s3 + $0x4] sm:$0xf]
  %v1297 = vld [vmem:[%s3 + $0x8] sm:$0xf]
  %v1298 = vld [vmem:[%s3 + $0xc] sm:$0xf]
  %v1299 = vld [vmem:[%s3 + $0x10] sm:$0xf]
  %v1300 = vld [vmem:[%s3 + $0x14] sm:$0xf]
  %v1301 = vld [vmem:[%s3 + $0x18] sm:$0xf]
  %v1302 = vld [vmem:[%s3 + $0x1c] sm:$0xf]
  %v1303 = vpack.c.bf16 %v1292, %v1292
  %v1304 = vld [vmem:[%s3 + $0x20] sm:$0xf]
  %v1305 = vld [vmem:[%s3 + $0x24] sm:$0xf]
  %v1306 = vld [vmem:[%s3 + $0x28] sm:$0xf]
  %v1307 = vld [vmem:[%s3 + $0x2c] sm:$0xf]
  %v1308 = vld [vmem:[%s3 + $0x30] sm:$0xf]
  %v1309 = vld [vmem:[%s3 + $0x34] sm:$0xf]
  %v1310 = vld [vmem:[%s3 + $0x38] sm:$0xf]
  %v1311 = vld [vmem:[%s3 + $0x3c] sm:$0xf]
  %v1312 = vld [vmem:[%s3 + $0x40] sm:$0xf]
  %v1313 = vld [vmem:[%s3 + $0x44] sm:$0xf]
  %v1314 = vld [vmem:[%s3 + $0x48] sm:$0xf]
  %v1315 = vld [vmem:[%s3 + $0x4c] sm:$0xf]
  %v1316 = vld [vmem:[%s3 + $0x50] sm:$0xf]
  %v1317 = vld [vmem:[%s3 + $0x54] sm:$0xf]
  %v1318 = vld [vmem:[%s3 + $0x58] sm:$0xf]
  %v1319 = vld [vmem:[%s3 + $0x5c] sm:$0xf]
  %v1336 = vunpack.c.l.b16 %v1304
  %v1337 = vunpack.c.l.b16 %v1305
  %v1338 = vunpack.c.l.b16 %v1306
  %v1339 = vunpack.c.l.b16 %v1307
  %v1340 = vunpack.c.l.b16 %v1308
  %v1341 = vunpack.c.l.b16 %v1309
  %v1342 = vunpack.c.l.b16 %v1310
  %v1343 = vunpack.c.l.b16 %v1311
  %v1344 = vunpack.c.l.b16 %v1312
  %v1345 = vunpack.c.l.b16 %v1313
  %v1346 = vunpack.c.l.b16 %v1314
  %v1347 = vunpack.c.l.b16 %v1315
  %v1348 = vunpack.c.l.b16 %v1316
  %v1349 = vunpack.c.l.b16 %v1317
  %v1350 = vunpack.c.l.b16 %v1318
  %v1351 = vunpack.c.l.b16 %v1319
  %v1352 = vpack.c.b16 %v1337, %v1336
  %v1353 = vpack.c.b16 %v1339, %v1338
  %v1354 = vpack.c.b16 %v1341, %v1340
  %v1355 = vpack.c.b16 %v1343, %v1342
  %v1356 = vpack.c.b16 %v1345, %v1344
  %v1357 = vpack.c.b16 %v1347, %v1346
  %v1358 = vpack.c.b16 %v1349, %v1348
  %v1359 = vpack.c.b16 %v1351, %v1350
  %1368 = vmatprep.subr.bf16.mxu0 0
  %1369 = vmatpush1.bf16.msra.mxu0 %v1352
  %1370 = vmatprep.subr.bf16.mxu0 0
  %1371 = vmatpush1.bf16.msra.mxu0 %v1353
  %1372 = vmatprep.subr.bf16.mxu0 0
  %1373 = vmatpush1.bf16.msra.mxu0 %v1354
  %1374 = vmatprep.subr.bf16.mxu0 0
  %1375 = vmatpush1.bf16.msra.mxu0 %v1355
  %1376 = vmatprep.subr.bf16.mxu0 0
  %1377 = vmatpush1.bf16.msra.mxu0 %v1356
  %1378 = vmatprep.subr.bf16.mxu0 0
  %1379 = vmatpush1.bf16.msra.mxu0 %v1357
  %1380 = vmatprep.subr.bf16.mxu0 0
  %1381 = vmatpush1.bf16.msra.mxu0 %v1358
  %1382 = vmatprep.subr.bf16.mxu0 0
  %1383 = vmatpush1.bf16.msra.mxu0 %v1359
  %1384 = vmatprep.subr.bf16.mxu0 0
  %1385 = vmatpush1.bf16.msra.mxu0 0
  %1386 = vmatprep.subr.bf16.mxu0 0
  %1387 = vmatpush1.bf16.msra.mxu0 0
  %1388 = vmatprep.subr.bf16.mxu0 0
  %1389 = vmatpush1.bf16.msra.mxu0 0
  %1390 = vmatprep.subr.bf16.mxu0 0
  %1391 = vmatpush1.bf16.msra.mxu0 0
  %1392 = vmatprep.subr.bf16.mxu0 0
  %1393 = vmatpush1.bf16.msra.mxu0 0
  %1394 = vmatprep.subr.bf16.mxu0 0
  %1395 = vmatpush1.bf16.msra.mxu0 0
  %1396 = vmatprep.subr.bf16.mxu0 0
  %1397 = vmatpush1.bf16.msra.mxu0 0
  %1398 = vmatprep.subr.bf16.mxu0 0
  %1399 = vmatpush1.bf16.msra.mxu0 0
  %1400 = vmatprep.mubr.bf16.mxu0 0
  %1401 = vmatmul.mubr.bf16.gmra.mrb[0].mxu0 %v1303
  %v1402 = vpop.f32.mrb[0].mxu0
  %v1403 = vadd.f32 0.0, %v1402
  %v1404 = vpop.f32.mrb[0].mxu0
  %v1405 = vpop.f32.mrb[0].mxu0
  %v1406 = vpop.f32.mrb[0].mxu0
  %1407 = vdwg.mxu0
  %v1416 = vunpack.c.l.b16 %v1295
  %v1417 = vunpack.c.l.b16 %v1296
  %v1418 = vunpack.c.l.b16 %v1297
  %v1419 = vunpack.c.l.b16 %v1298
  %v1420 = vunpack.c.l.b16 %v1299
  %v1421 = vunpack.c.l.b16 %v1300
  %v1422 = vunpack.c.l.b16 %v1301
  %v1423 = vunpack.c.l.b16 %v1302
  %v1424 = vpack.c.b16 %v1417, %v1416
  %v1425 = vpack.c.b16 %v1419, %v1418
  %v1426 = vpack.c.b16 %v1421, %v1420
  %v1427 = vpack.c.b16 %v1423, %v1422
  %v1433 = vsel %vm136, %v1294, 0
  %1435 = vmatprep.subr.bf16.mxu0 0
  %1436 = vmatpush1.bf16.msra.mxu0 %v1424
  %1437 = vmatprep.subr.bf16.mxu0 0
  %1438 = vmatpush1.bf16.msra.mxu0 %v1425
  %1439 = vmatprep.subr.bf16.mxu0 0
  %1440 = vmatpush1.bf16.msra.mxu0 %v1426
  %1441 = vmatprep.subr.bf16.mxu0 0
  %1442 = vmatpush1.bf16.msra.mxu0 %v1427
  %1443 = vmatprep.subr.bf16.mxu0 0
  %1444 = vmatpush1.bf16.msra.mxu0 0
  %1445 = vmatprep.subr.bf16.mxu0 0
  %1446 = vmatpush1.bf16.msra.mxu0 0
  %1447 = vmatprep.subr.bf16.mxu0 0
  %1448 = vmatpush1.bf16.msra.mxu0 0
  %1449 = vmatprep.subr.bf16.mxu0 0
  %1450 = vmatpush1.bf16.msra.mxu0 0
  %1451 = vmatprep.subr.bf16.mxu0 0
  %1452 = vmatpush1.bf16.msra.mxu0 0
  %1453 = vmatprep.subr.bf16.mxu0 0
  %1454 = vmatpush1.bf16.msra.mxu0 0
  %1455 = vmatprep.subr.bf16.mxu0 0
  %1456 = vmatpush1.bf16.msra.mxu0 0
  %1457 = vmatprep.subr.bf16.mxu0 0
  %1458 = vmatpush1.bf16.msra.mxu0 0
  %1459 = vmatprep.subr.bf16.mxu0 0
  %1460 = vmatpush1.bf16.msra.mxu0 0
  %1461 = vmatprep.subr.bf16.mxu0 0
  %1462 = vmatpush1.bf16.msra.mxu0 0
  %1463 = vmatprep.subr.bf16.mxu0 0
  %1464 = vmatpush1.bf16.msra.mxu0 0
  %1465 = vmatprep.subr.bf16.mxu0 0
  %1466 = vmatpush1.bf16.msra.mxu0 0
  %1467 = vmatprep.mubr.bf16.mxu0 0
  %1468 = vmatmul.mubr.bf16.gmra.mrb[0].mxu0 %v1433
  %v1469 = vpop.f32.mrb[0].mxu0
  %v1470 = vadd.f32 %v1403, %v1469
  %v1471 = vpop.f32.mrb[0].mxu0
  %v1472 = vpop.f32.mrb[0].mxu0
  %v1473 = vpop.f32.mrb[0].mxu0
  %1474 = vdwg.mxu0
  %v1475 = vlaneseq
  %v1476 = vshrl.u32 %v1475, 7
  %v1477 = vsub.s32 0, %v1476
  %v1478 = vrot.slane %v39, %v1477
  %v1479 = vadd.f32 %v1470, %v1478
  %1480 = vst [vmem:[%s5] sm:$0xff] %v1479
  // Predicated region
  $region22: #{_lambda_.1} parent=0 // pred_check
    _
  $region23: #{_lambda_.1} parent=0 // pred_check_branch
    %1482 = sbr.rel (0) target = $region25
  $region24: #{_lambda_.1} parent=0 // pred_region
    _
  $region25: #{_lambda_.1} parent=0 // pred_fallthru
    _
  // Predicated region
  $region26: #{_lambda_.1} parent=0 // pred_check
    _
  $region27: #{_lambda_.1} parent=0 // pred_check_branch
    %1484 = sbr.rel (0) target = $region29
  $region28: #{_lambda_.1} parent=0 // pred_region
    _
  $region29: #{_lambda_.1} parent=0 // pred_fallthru
    _

</llo_original>
